<compile_context>
chip_gen: v5e
topology: v5e:2x2
jax: 0.10.0
libtpu: 0.0.40
codegen_flags: <defaults>
</compile_context>

<pallas_src>
import functools

import jax
import jax.numpy as jnp
from jax.experimental import pallas as pl
from jax.experimental.pallas import tpu as pltpu

LANE = 128
RESIDENT_H_BYTES = 8 << 20          # keep <=~16 MB with double buffering
VMEM_LIMIT_BYTES = 64 << 20


# ---------------------------------------------------------------------------
# Padding / tiling helpers
# ---------------------------------------------------------------------------
def _pad_to(n, m):
    return ((n + m - 1) // m) * m


def _pad2d(x, rows, cols):
    return jnp.pad(x, ((0, rows - x.shape[0]), (0, cols - x.shape[1])))


def _pick_tile(dim, cap):
    """Largest 128-multiple tile <= cap that divides dim (dim is 128-aligned)."""
    for t in (1024, 512, 256, 128):
        if t <= cap and dim % t == 0:
            return t
    return min(dim, 128)


# ---------------------------------------------------------------------------
# Pallas kernels
# ---------------------------------------------------------------------------
def fused_gcn_layer_kernel(a_ref, h_ref, w_ref, b_ref, o_ref, acc_ref, *,
                           tk, h_resident, apply_relu):
    """O = A_hat @ (H @ W) + b (+ ReLU), projection fused into the k loop.

    a_ref : (tm, tk)  bf16 A_hat tile (the only per-(i,k) HBM stream)
    h_ref : (N, C_in) bf16 resident, or (tk, C_in) streamed per k
    w_ref : (C_in, tn) bf16 resident per j
    """
    k = pl.program_id(2)

    @pl.when(k == 0)
    def _():
        acc_ref[...] = jnp.zeros_like(acc_ref)

    if h_resident:
        h_tile = h_ref[pl.ds(pl.multiple_of(k * tk, LANE), tk), :]
    else:
        h_tile = h_ref[...]
    # On-the-fly projection (f32 accumulate on the MXU, bf16 for the SpMM).
    hw = jnp.dot(h_tile, w_ref[...], preferred_element_type=jnp.float32)
    acc_ref[...] += jnp.dot(a_ref[...], hw.astype(a_ref.dtype),
                            preferred_element_type=jnp.float32)

    @pl.when(k == pl.num_programs(2) - 1)
    def _():
        out = acc_ref[...] + b_ref[...]
        if apply_relu:
            out = jnp.maximum(out, 0.0)
        o_ref[...] = out.astype(o_ref.dtype)


def fused_last_layer_head_kernel(a_ref, h_ref, w_ref, b_ref, wfc_ref, bfc_ref,
                                 z_ref, p_ref, acc_ref, *, tk, h_resident,
                                 num_class):
    """Last GCN layer (projection fused) + classification-head epilogue.

    z = A_hat @ (H @ W) + b                              (output 1, f32)
    p = softmax(relu(z) @ W_fc + b_fc) over real classes (output 2, f32)
    """
    k = pl.program_id(1)

    @pl.when(k == 0)
    def _():
        acc_ref[...] = jnp.zeros_like(acc_ref)

    if h_resident:
        h_tile = h_ref[pl.ds(pl.multiple_of(k * tk, LANE), tk), :]
    else:
        h_tile = h_ref[...]
    hw = jnp.dot(h_tile, w_ref[...], preferred_element_type=jnp.float32)
    acc_ref[...] += jnp.dot(a_ref[...], hw.astype(a_ref.dtype),
                            preferred_element_type=jnp.float32)

    @pl.when(k == pl.num_programs(1) - 1)
    def _():
        z = acc_ref[...] + b_ref[...]
        z_ref[...] = z.astype(z_ref.dtype)
        y = jnp.dot(jnp.maximum(z, 0.0), wfc_ref[...],
                    preferred_element_type=jnp.float32) + bfc_ref[...]
        # Mask padded class columns out of the softmax.
        col = jax.lax.broadcasted_iota(jnp.int32, y.shape, 1)
        y = jnp.where(col < num_class, y, -jnp.inf)
        m = jnp.max(y, axis=1, keepdims=True)
        e = jnp.exp(y - m)
        denom = jnp.sum(e, axis=1, keepdims=True)
        # Exact divide (approx EUP reciprocal left row sums ~1e-2 off).
        p_ref[...] = (e / denom).astype(p_ref.dtype)


# ---------------------------------------------------------------------------
# Pallas wrappers (tiled grids, lane-padded shapes)
# ---------------------------------------------------------------------------
def fused_gcn_layer(a_hat, h, w, b, *, apply_relu):
    """O = A_hat @ (H @ W) + b (+ ReLU) in one pallas_call."""
    n = a_hat.shape[0]
    c_in = h.shape[1]
    c_out = w.shape[1]
    tm = _pick_tile(n, 512)
    tn = _pick_tile(c_out, 512)
    tk = _pick_tile(n, 1024)

    h_resident = n * c_in * h.dtype.itemsize <= RESIDENT_H_BYTES
    if h_resident:
        h_spec = pl.BlockSpec((n, c_in), lambda i, j, k: (0, 0))
        h_reads = (c_out // tn) * n * c_in * 2          # once per j tile
    else:
        h_spec = pl.BlockSpec((tk, c_in), lambda i, j, k: (k, 0))
        h_reads = (c_out // tn) * (n // tm) * n * c_in * 2

    kernel = functools.partial(fused_gcn_layer_kernel, tk=tk,
                               h_resident=h_resident, apply_relu=apply_relu)
    return pl.pallas_call(
        kernel,
        out_shape=jax.ShapeDtypeStruct((n, c_out), jnp.bfloat16),
        grid=(n // tm, c_out // tn, n // tk),
        in_specs=[
            # TODO(synk): on v7x sweep pipeline_mode=pl.Buffered(3) on A_hat.
            pl.BlockSpec((tm, tk), lambda i, j, k: (i, k)),
            h_spec,
            pl.BlockSpec((c_in, tn), lambda i, j, k: (0, j)),
            pl.BlockSpec((1, tn), lambda i, j, k: (0, j)),
        ],
        out_specs=pl.BlockSpec((tm, tn), lambda i, j, k: (i, j)),
        scratch_shapes=[pltpu.VMEM((tm, tn), jnp.float32)],
        compiler_params=pltpu.CompilerParams(
            dimension_semantics=("parallel", "parallel", "arbitrary"),
            vmem_limit_bytes=VMEM_LIMIT_BYTES),
        cost_estimate=pl.CostEstimate(
            flops=2 * n * n * c_out + 2 * n * c_in * c_out * (n // tm),
            transcendentals=0,
            bytes_accessed=2 * n * n + h_reads + 2 * c_in * c_out
                           + 4 * c_out + 2 * n * c_out),
    )(a_hat, h, w, b)


def fused_last_layer_with_head(a_hat, h, w, b, w_fc, b_fc, *, num_class):
    """Last GCN layer + fused classification head (z and softmax probs)."""
    n = a_hat.shape[0]
    c_in = h.shape[1]
    c = w.shape[1]                 # padded out_channels, full width per i tile
    nc_p = w_fc.shape[1]
    tm = _pick_tile(n, 256)        # modest: epilogue keeps (tm, c) f32 temps live
    tk = _pick_tile(n, 1024)

    h_resident = n * c_in * h.dtype.itemsize <= RESIDENT_H_BYTES
    if h_resident:
        h_spec = pl.BlockSpec((n, c_in), lambda i, k: (0, 0))
        h_reads = n * c_in * 2
    else:
        h_spec = pl.BlockSpec((tk, c_in), lambda i, k: (k, 0))
        h_reads = (n // tm) * n * c_in * 2

    kernel = functools.partial(fused_last_layer_head_kernel, tk=tk,
                               h_resident=h_resident, num_class=num_class)
    return pl.pallas_call(
        kernel,
        out_shape=(jax.ShapeDtypeStruct((n, c), jnp.float32),
                   jax.ShapeDtypeStruct((n, nc_p), jnp.float32)),
        grid=(n // tm, n // tk),
        in_specs=[
            pl.BlockSpec((tm, tk), lambda i, k: (i, k)),
            h_spec,
            pl.BlockSpec((c_in, c), lambda i, k: (0, 0)),
            pl.BlockSpec((1, c), lambda i, k: (0, 0)),
            pl.BlockSpec((c, nc_p), lambda i, k: (0, 0)),
            pl.BlockSpec((1, nc_p), lambda i, k: (0, 0)),
        ],
        out_specs=(pl.BlockSpec((tm, c), lambda i, k: (i, 0)),
                   pl.BlockSpec((tm, nc_p), lambda i, k: (i, 0))),
        scratch_shapes=[pltpu.VMEM((tm, c), jnp.float32)],
        compiler_params=pltpu.CompilerParams(
            dimension_semantics=("parallel", "arbitrary"),
            vmem_limit_bytes=VMEM_LIMIT_BYTES),
        cost_estimate=pl.CostEstimate(
            flops=2 * n * n * c + 2 * n * c_in * c * (n // tm)
                  + 2 * n * c * nc_p,
            transcendentals=n * nc_p,
            bytes_accessed=2 * n * n + h_reads + 2 * c_in * c
                           + 4 * c * nc_p + 4 * n * c + 4 * n * nc_p),
    )(a_hat, h, w, b, w_fc, b_fc)


# ---------------------------------------------------------------------------
# Glue: dense normalized adjacency, parameter init, full forward
# ---------------------------------------------------------------------------
def build_norm_adj(edge_index, num_nodes):
    """A_hat = D^-1/2 (A + I) D^-1/2 from a (2, E) edge_index (src, dst)."""
    src, dst = edge_index[0], edge_index[1]
    a = jnp.zeros((num_nodes, num_nodes), jnp.float32).at[dst, src].add(1.0)
    a = a + jnp.eye(num_nodes, dtype=jnp.float32)            # self-loops
    deg = jnp.sum(a, axis=1)
    d_inv_sqrt = 1.0 / jnp.sqrt(deg)
    return d_inv_sqrt[:, None] * a * d_inv_sqrt[None, :]


def glorot(key, shape):
    limit = jnp.sqrt(6.0 / (shape[0] + shape[1]))
    return jax.random.uniform(key, shape, jnp.float32, -limit, limit)


def init_params(key, num_layers, in_channels, hidden_channels, out_channels,
                num_class):
    dims = [in_channels] + [hidden_channels] * (num_layers - 1) + [out_channels]
    params = {"gcn_w": [], "gcn_b": []}
    keys = jax.random.split(key, num_layers + 1)
    for li in range(num_layers):
        params["gcn_w"].append(glorot(keys[li], (dims[li], dims[li + 1])))
        params["gcn_b"].append(jnp.zeros((1, dims[li + 1]), jnp.float32))
    params["fc_w"] = glorot(keys[-1], (out_channels, num_class))
    params["fc_b"] = jnp.zeros((1, num_class), jnp.float32)
    return params


def gnn_backbone_forward(params, x, edge_index):
    """Returns (z, softmax(fc(relu(z)), dim=1)) — same as the PyTorch module."""
    n, c_in = x.shape
    num_layers = len(params["gcn_w"])
    num_class = params["fc_w"].shape[1]
    out_channels = params["gcn_w"][-1].shape[1]

    n_p = _pad_to(max(n, LANE), LANE)

    # Dense normalized adjacency, padded + cast to bf16 once.
    # TODO(synk): for large sparse graphs replace the dense (N,N) A_hat with a
    # block-sparse / scalar-prefetch gathered SpMM to avoid O(N^2) traffic.
    a_hat = build_norm_adj(edge_index, n)
    a_hat = _pad2d(a_hat, n_p, n_p).astype(jnp.bfloat16)

    h = _pad2d(x, n_p, _pad_to(c_in, LANE)).astype(jnp.bfloat16)

    # TODO(synk): when (N,N) A_hat fits VMEM, fold the whole layer loop into a
    # single pallas_call so A_hat is DMA'd from HBM once total, not per layer.
    z_p = probs_p = None
    for li in range(num_layers):
        w = params["gcn_w"][li]
        b = params["gcn_b"][li]
        c_out_p = _pad_to(w.shape[1], LANE)
        w_pad = _pad2d(w, h.shape[1], c_out_p).astype(jnp.bfloat16)
        b_pad = _pad2d(b, 1, c_out_p)                       # bias stays f32

        last = li == num_layers - 1
        # TODO(synk): dropout(p=0.2) between layers is training-only; identity here.
        if not last:
            h = fused_gcn_layer(a_hat, h, w_pad, b_pad, apply_relu=True)
        else:
            nc_p = _pad_to(num_class, LANE)
            w_fc = _pad2d(params["fc_w"], c_out_p, nc_p)    # f32 head weights
            b_fc = _pad2d(params["fc_b"], 1, nc_p)
            z_p, probs_p = fused_last_layer_with_head(
                a_hat, h, w_pad, b_pad, w_fc, b_fc, num_class=num_class)

    z = z_p[:n, :out_channels]
    probs = probs_p[:n, :num_class]
    return z, probs


def reference_forward(params, x, edge_index):
    """Pure-JAX f32 reference of the same forward pass."""
    a = build_norm_adj(edge_index, x.shape[0])
    h = x
    num_layers = len(params["gcn_w"])
    for li in range(num_layers):
        h = a @ (h @ params["gcn_w"][li]) + params["gcn_b"][li]
        if li < num_layers - 1:
            h = jnp.maximum(h, 0.0)
    z = h
    y = jnp.maximum(z, 0.0) @ params["fc_w"] + params["fc_b"]
    return z, jax.nn.softmax(y, axis=1)


# ---------------------------------------------------------------------------
# Demo
# ---------------------------------------------------------------------------
if __name__ == "__main__":
    NUM_NODES = 16
    IN_CH = 8
    HIDDEN_CH = 32
    OUT_CH = 16
    NUM_CLASS = 4
    NUM_LAYERS = 2

    key = jax.random.PRNGKey(0)
    k_x, k_p = jax.random.split(key)

    x = jax.random.normal(k_x, (NUM_NODES, IN_CH), jnp.float32)
    # Deterministic small graph: a bidirectional ring over NUM_NODES nodes.
    src = jnp.arange(NUM_NODES, dtype=jnp.int32)
    dst = (src + 1) % NUM_NODES
    edge_index = jnp.stack(
        [jnp.concatenate([src, dst]), jnp.concatenate([dst, src])], axis=0)

    params = init_params(k_p, NUM_LAYERS, IN_CH, HIDDEN_CH, OUT_CH, NUM_CLASS)

    fwd = jax.jit(gnn_backbone_forward)
    z, probs = fwd(params, x, edge_index)
    jax.block_until_ready((z, probs))

    assert z.shape == (NUM_NODES, OUT_CH)
    assert probs.shape == (NUM_NODES, NUM_CLASS)
    # softmax rows sum to 1 (exact divide in the epilogue)
    assert jnp.allclose(jnp.sum(probs, axis=1), 1.0, atol=1e-3)

    # validate against the f32 pure-JAX reference (bf16 inputs, f32 accumulate)
    z_ref, p_ref = reference_forward(params, x, edge_index)
    assert jnp.allclose(z, z_ref, atol=6e-2, rtol=6e-2)
    assert jnp.allclose(probs, p_ref, atol=3e-2, rtol=3e-2)

    print("KERNEL_OK")
</pallas_src>

<mosaic_0001>
module attributes {stable_mosaic.version = 11 : i64} {
  func.func @fused_gcn_layer_kernel(%arg0: i32, %arg1: i32, %arg2: i32, %arg3: memref<128x128xbf16, #tpu.memory_space<vmem>>, %arg4: memref<128x128xbf16, #tpu.memory_space<vmem>>, %arg5: memref<128x128xbf16, #tpu.memory_space<vmem>>, %arg6: memref<1x128xf32, #tpu.memory_space<vmem>>, %arg7: memref<128x128xbf16, #tpu.memory_space<vmem>>, %arg8: memref<128x128xf32, #tpu.memory_space<vmem>>) attributes {dimension_semantics = [#tpu.dimension_semantics<parallel>, #tpu.dimension_semantics<parallel>, #tpu.dimension_semantics<arbitrary>], iteration_bounds = array<i64: 1, 1, 1>, scalar_prefetch = 0 : i64, scratch_operands = 1 : i64, tpu.core_type = #tpu.core_type<tc>, window_params = [{transform_indices = @transform_0, window_bounds = array<i64: 128, 128>}, {pipeline_mode = #tpu.pipeline_mode<synchronous>, transform_indices = @transform_1, window_bounds = array<i64: 128, 128>}, {transform_indices = @transform_2, window_bounds = array<i64: 128, 128>}, {transform_indices = @transform_3, window_bounds = array<i64: 1, 128>}, {transform_indices = @transform_4, window_bounds = array<i64: 128, 128>}]} {
    %c0_i32 = arith.constant 0 : i32
    %0 = arith.cmpi eq, %arg2, %c0_i32 : i32
    %1 = arith.extui %0 : i1 to i32
    %c0_i32_0 = arith.constant 0 : i32
    %2 = arith.cmpi ne, %1, %c0_i32_0 : i32
    scf.if %2 {
      %cst_12 = arith.constant 0.000000e+00 : f32
      %18 = vector.broadcast %cst_12 : f32 to vector<128x128xf32>
      %c0_13 = arith.constant 0 : index
      %c0_14 = arith.constant 0 : index
      %19 = vector.load %arg8[%c0_13, %c0_14] : memref<128x128xf32, #tpu.memory_space<vmem>>, vector<128x128xf32>
      tpu.vector_store %arg8[%c0_13, %c0_14], %18 {strides = array<i32>} : memref<128x128xf32, #tpu.memory_space<vmem>>, vector<128x128xf32>,
    } else {
    }
    %c128_i32 = arith.constant 128 : i32
    %3 = arith.muli %arg2, %c128_i32 : i32
    %4 = tpu.assume_multiple %3, 128 : i32
    %5 = arith.index_cast %4 : i32 to index
    %c0 = arith.constant 0 : index
    %6 = vector.load %arg4[%5, %c0] : memref<128x128xbf16, #tpu.memory_space<vmem>>, vector<128x128xbf16>
    %c0_1 = arith.constant 0 : index
    %c0_2 = arith.constant 0 : index
    %7 = vector.load %arg5[%c0_1, %c0_2] : memref<128x128xbf16, #tpu.memory_space<vmem>>, vector<128x128xbf16>
    %cst = arith.constant dense<0.000000e+00> : vector<128x128xf32>
    %8 = tpu.matmul %6, %7, %cst {dimension_numbers = #tpu.dot_dimension_numbers<[1], [0], [0], [1], [0, 0, 1, 1], [], []>} : vector<128x128xbf16>, vector<128x128xbf16>, vector<128x128xf32> -> vector<128x128xf32>
    %c0_3 = arith.constant 0 : index
    %c0_4 = arith.constant 0 : index
    %9 = vector.load %arg8[%c0_3, %c0_4] : memref<128x128xf32, #tpu.memory_space<vmem>>, vector<128x128xf32>
    %c0_5 = arith.constant 0 : index
    %c0_6 = arith.constant 0 : index
    %10 = vector.load %arg3[%c0_5, %c0_6] : memref<128x128xbf16, #tpu.memory_space<vmem>>, vector<128x128xbf16>
    %11 = arith.truncf %8 : vector<128x128xf32> to vector<128x128xbf16>
    %cst_7 = arith.constant dense<0.000000e+00> : vector<128x128xf32>
    %12 = tpu.matmul %10, %11, %cst_7 {dimension_numbers = #tpu.dot_dimension_numbers<[1], [0], [0], [1], [0, 0, 1, 1], [], []>} : vector<128x128xbf16>, vector<128x128xbf16>, vector<128x128xf32> -> vector<128x128xf32>
    %13 = arith.addf %9, %12 : vector<128x128xf32>
    %c0_8 = arith.constant 0 : index
    %c0_9 = arith.constant 0 : index
    %14 = vector.load %arg8[%c0_8, %c0_9] : memref<128x128xf32, #tpu.memory_space<vmem>>, vector<128x128xf32>
    tpu.vector_store %arg8[%c0_8, %c0_9], %13 {strides = array<i32>} : memref<128x128xf32, #tpu.memory_space<vmem>>, vector<128x128xf32>,
    %c0_i32_10 = arith.constant 0 : i32
    %15 = arith.cmpi eq, %arg2, %c0_i32_10 : i32
    %16 = arith.extui %15 : i1 to i32
    %c0_i32_11 = arith.constant 0 : i32
    %17 = arith.cmpi ne, %16, %c0_i32_11 : i32
    scf.if %17 {
      %c0_12 = arith.constant 0 : index
      %c0_13 = arith.constant 0 : index
      %18 = vector.load %arg8[%c0_12, %c0_13] : memref<128x128xf32, #tpu.memory_space<vmem>>, vector<128x128xf32>
      %c0_14 = arith.constant 0 : index
      %c0_15 = arith.constant 0 : index
      %19 = vector.load %arg6[%c0_14, %c0_15] : memref<1x128xf32, #tpu.memory_space<vmem>>, vector<1x128xf32>
      %20 = vector.broadcast %19 : vector<1x128xf32> to vector<128x128xf32>
      %21 = arith.addf %18, %20 : vector<128x128xf32>
      %cst_16 = arith.constant 0.000000e+00 : f32
      %22 = vector.broadcast %cst_16 : f32 to vector<128x128xf32>
      %23 = arith.maximumf %21, %22 : vector<128x128xf32>
      %24 = arith.truncf %23 : vector<128x128xf32> to vector<128x128xbf16>
      %c0_17 = arith.constant 0 : index
      %c0_18 = arith.constant 0 : index
      %25 = vector.load %arg7[%c0_17, %c0_18] : memref<128x128xbf16, #tpu.memory_space<vmem>>, vector<128x128xbf16>
      tpu.vector_store %arg7[%c0_17, %c0_18], %24 {strides = array<i32>} : memref<128x128xbf16, #tpu.memory_space<vmem>>, vector<128x128xbf16>,
    } else {
    }
    return
  }
  func.func @transform_0(%arg0: i32, %arg1: i32, %arg2: i32) -> (i32, i32) {
    %c0_i32 = arith.constant 0 : i32
    return %arg0, %arg2 : i32, i32
  }
  func.func @transform_1(%arg0: i32, %arg1: i32, %arg2: i32) -> (i32, i32) {
    %c0_i32 = arith.constant 0 : i32
    %c0_i32_0 = arith.constant 0 : i32
    %c0_i32_1 = arith.constant 0 : i32
    return %c0_i32, %c0_i32_0 : i32, i32
  }
  func.func @transform_2(%arg0: i32, %arg1: i32, %arg2: i32) -> (i32, i32) {
    %c0_i32 = arith.constant 0 : i32
    %c0_i32_0 = arith.constant 0 : i32
    return %c0_i32, %arg1 : i32, i32
  }
  func.func @transform_3(%arg0: i32, %arg1: i32, %arg2: i32) -> (i32, i32) {
    %c0_i32 = arith.constant 0 : i32
    %c0_i32_0 = arith.constant 0 : i32
    return %c0_i32, %arg1 : i32, i32
  }
  func.func @transform_4(%arg0: i32, %arg1: i32, %arg2: i32) -> (i32, i32) {
    %c0_i32 = arith.constant 0 : i32
    return %arg0, %arg1 : i32, i32
  }
}

module attributes {stable_mosaic.version = 11 : i64} {
  func.func @fused_last_layer_head_kernel(%arg0: i32, %arg1: i32, %arg2: memref<128x128xbf16, #tpu.memory_space<vmem>>, %arg3: memref<128x128xbf16, #tpu.memory_space<vmem>>, %arg4: memref<128x128xbf16, #tpu.memory_space<vmem>>, %arg5: memref<1x128xf32, #tpu.memory_space<vmem>>, %arg6: memref<128x128xf32, #tpu.memory_space<vmem>>, %arg7: memref<1x128xf32, #tpu.memory_space<vmem>>, %arg8: memref<128x128xf32, #tpu.memory_space<vmem>>, %arg9: memref<128x128xf32, #tpu.memory_space<vmem>>, %arg10: memref<128x128xf32, #tpu.memory_space<vmem>>) attributes {dimension_semantics = [#tpu.dimension_semantics<parallel>, #tpu.dimension_semantics<arbitrary>], iteration_bounds = array<i64: 1, 1>, scalar_prefetch = 0 : i64, scratch_operands = 1 : i64, tpu.core_type = #tpu.core_type<tc>, window_params = [{transform_indices = @transform_0, window_bounds = array<i64: 128, 128>}, {pipeline_mode = #tpu.pipeline_mode<synchronous>, transform_indices = @transform_1, window_bounds = array<i64: 128, 128>}, {pipeline_mode = #tpu.pipeline_mode<synchronous>, transform_indices = @transform_2, window_bounds = array<i64: 128, 128>}, {pipeline_mode = #tpu.pipeline_mode<synchronous>, transform_indices = @transform_3, window_bounds = array<i64: 1, 128>}, {pipeline_mode = #tpu.pipeline_mode<synchronous>, transform_indices = @transform_4, window_bounds = array<i64: 128, 128>}, {pipeline_mode = #tpu.pipeline_mode<synchronous>, transform_indices = @transform_5, window_bounds = array<i64: 1, 128>}, {transform_indices = @transform_6, window_bounds = array<i64: 128, 128>}, {transform_indices = @transform_7, window_bounds = array<i64: 128, 128>}]} {
    %c0_i32 = arith.constant 0 : i32
    %0 = arith.cmpi eq, %arg1, %c0_i32 : i32
    %1 = arith.extui %0 : i1 to i32
    %c0_i32_0 = arith.constant 0 : i32
    %2 = arith.cmpi ne, %1, %c0_i32_0 : i32
    scf.if %2 {
      %cst_12 = arith.constant 0.000000e+00 : f32
      %18 = vector.broadcast %cst_12 : f32 to vector<128x128xf32>
      %c0_13 = arith.constant 0 : index
      %c0_14 = arith.constant 0 : index
      %19 = vector.load %arg10[%c0_13, %c0_14] : memref<128x128xf32, #tpu.memory_space<vmem>>, vector<128x128xf32>
      tpu.vector_store %arg10[%c0_13, %c0_14], %18 {strides = array<i32>} : memref<128x128xf32, #tpu.memory_space<vmem>>, vector<128x128xf32>,
    } else {
    }
    %c128_i32 = arith.constant 128 : i32
    %3 = arith.muli %arg1, %c128_i32 : i32
    %4 = tpu.assume_multiple %3, 128 : i32
    %5 = arith.index_cast %4 : i32 to index
    %c0 = arith.constant 0 : index
    %6 = vector.load %arg3[%5, %c0] : memref<128x128xbf16, #tpu.memory_space<vmem>>, vector<128x128xbf16>
    %c0_1 = arith.constant 0 : index
    %c0_2 = arith.constant 0 : index
    %7 = vector.load %arg4[%c0_1, %c0_2] : memref<128x128xbf16, #tpu.memory_space<vmem>>, vector<128x128xbf16>
    %cst = arith.constant dense<0.000000e+00> : vector<128x128xf32>
    %8 = tpu.matmul %6, %7, %cst {dimension_numbers = #tpu.dot_dimension_numbers<[1], [0], [0], [1], [0, 0, 1, 1], [], []>} : vector<128x128xbf16>, vector<128x128xbf16>, vector<128x128xf32> -> vector<128x128xf32>
    %c0_3 = arith.constant 0 : index
    %c0_4 = arith.constant 0 : index
    %9 = vector.load %arg10[%c0_3, %c0_4] : memref<128x128xf32, #tpu.memory_space<vmem>>, vector<128x128xf32>
    %c0_5 = arith.constant 0 : index
    %c0_6 = arith.constant 0 : index
    %10 = vector.load %arg2[%c0_5, %c0_6] : memref<128x128xbf16, #tpu.memory_space<vmem>>, vector<128x128xbf16>
    %11 = arith.truncf %8 : vector<128x128xf32> to vector<128x128xbf16>
    %cst_7 = arith.constant dense<0.000000e+00> : vector<128x128xf32>
    %12 = tpu.matmul %10, %11, %cst_7 {dimension_numbers = #tpu.dot_dimension_numbers<[1], [0], [0], [1], [0, 0, 1, 1], [], []>} : vector<128x128xbf16>, vector<128x128xbf16>, vector<128x128xf32> -> vector<128x128xf32>
    %13 = arith.addf %9, %12 : vector<128x128xf32>
    %c0_8 = arith.constant 0 : index
    %c0_9 = arith.constant 0 : index
    %14 = vector.load %arg10[%c0_8, %c0_9] : memref<128x128xf32, #tpu.memory_space<vmem>>, vector<128x128xf32>
    tpu.vector_store %arg10[%c0_8, %c0_9], %13 {strides = array<i32>} : memref<128x128xf32, #tpu.memory_space<vmem>>, vector<128x128xf32>,
    %c0_i32_10 = arith.constant 0 : i32
    %15 = arith.cmpi eq, %arg1, %c0_i32_10 : i32
    %16 = arith.extui %15 : i1 to i32
    %c0_i32_11 = arith.constant 0 : i32
    %17 = arith.cmpi ne, %16, %c0_i32_11 : i32
    scf.if %17 {
      %c0_12 = arith.constant 0 : index
      %c0_13 = arith.constant 0 : index
      %18 = vector.load %arg10[%c0_12, %c0_13] : memref<128x128xf32, #tpu.memory_space<vmem>>, vector<128x128xf32>
      %c0_14 = arith.constant 0 : index
      %c0_15 = arith.constant 0 : index
      %19 = vector.load %arg5[%c0_14, %c0_15] : memref<1x128xf32, #tpu.memory_space<vmem>>, vector<1x128xf32>
      %20 = vector.broadcast %19 : vector<1x128xf32> to vector<128x128xf32>
      %21 = arith.addf %18, %20 : vector<128x128xf32>
      %c0_16 = arith.constant 0 : index
      %c0_17 = arith.constant 0 : index
      %22 = vector.load %arg8[%c0_16, %c0_17] : memref<128x128xf32, #tpu.memory_space<vmem>>, vector<128x128xf32>
      tpu.vector_store %arg8[%c0_16, %c0_17], %21 {strides = array<i32>} : memref<128x128xf32, #tpu.memory_space<vmem>>, vector<128x128xf32>,
      %cst_18 = arith.constant 0.000000e+00 : f32
      %23 = vector.broadcast %cst_18 : f32 to vector<128x128xf32>
      %24 = arith.maximumf %21, %23 : vector<128x128xf32>
      %c0_19 = arith.constant 0 : index
      %c0_20 = arith.constant 0 : index
      %25 = vector.load %arg6[%c0_19, %c0_20] : memref<128x128xf32, #tpu.memory_space<vmem>>, vector<128x128xf32>
      %cst_21 = arith.constant dense<0.000000e+00> : vector<128x128xf32>
      %26 = tpu.matmul %24, %25, %cst_21 {dimension_numbers = #tpu.dot_dimension_numbers<[1], [0], [0], [1], [0, 0, 1, 1], [], []>} : vector<128x128xf32>, vector<128x128xf32>, vector<128x128xf32> -> vector<128x128xf32>
      %c0_22 = arith.constant 0 : index
      %c0_23 = arith.constant 0 : index
      %27 = vector.load %arg7[%c0_22, %c0_23] : memref<1x128xf32, #tpu.memory_space<vmem>>, vector<1x128xf32>
      %28 = vector.broadcast %27 : vector<1x128xf32> to vector<128x128xf32>
      %29 = arith.addf %26, %28 : vector<128x128xf32>
      %30 = tpu.iota {dimensions = array<i32: 1>} : vector<128x128xi32>
      %c4_i32 = arith.constant 4 : i32
      %31 = vector.broadcast %c4_i32 : i32 to vector<128x128xi32>
      %32 = arith.cmpi slt, %30, %31 : vector<128x128xi32>
      %cst_24 = arith.constant 0xFF800000 : f32
      %33 = vector.broadcast %cst_24 : f32 to vector<128x128xf32>
      %34 = arith.select %32, %29, %33 : vector<128x128xi1>, vector<128x128xf32>
      %cst_25 = arith.constant dense<0xFF800000> : vector<128xf32>
      %35 = vector.multi_reduction <maximumf>, %34, %cst_25 [1] : vector<128x128xf32> to vector<128xf32>
      %36 = vector.shape_cast %35 : vector<128xf32> to vector<128x1xf32>
      %37 = vector.broadcast %36 : vector<128x1xf32> to vector<128x128xf32>
      %38 = arith.subf %34, %37 : vector<128x128xf32>
      %39 = math.exp %38 : vector<128x128xf32>
      %cst_26 = arith.constant dense<0.000000e+00> : vector<128xf32>
      %40 = vector.multi_reduction <add>, %39, %cst_26 [1] : vector<128x128xf32> to vector<128xf32>
      %41 = vector.shape_cast %40 : vector<128xf32> to vector<128x1xf32>
      %42 = vector.broadcast %41 : vector<128x1xf32> to vector<128x128xf32>
      %43 = arith.divf %39, %42 : vector<128x128xf32>
      %c0_27 = arith.constant 0 : index
      %c0_28 = arith.constant 0 : index
      %44 = vector.load %arg9[%c0_27, %c0_28] : memref<128x128xf32, #tpu.memory_space<vmem>>, vector<128x128xf32>
      tpu.vector_store %arg9[%c0_27, %c0_28], %43 {strides = array<i32>} : memref<128x128xf32, #tpu.memory_space<vmem>>, vector<128x128xf32>,
    } else {
    }
    return
  }
  func.func @transform_0(%arg0: i32, %arg1: i32) -> (i32, i32) {
    %c0_i32 = arith.constant 0 : i32
    return %arg0, %arg1 : i32, i32
  }
  func.func @transform_1(%arg0: i32, %arg1: i32) -> (i32, i32) {
    %c0_i32 = arith.constant 0 : i32
    %c0_i32_0 = arith.constant 0 : i32
    %c0_i32_1 = arith.constant 0 : i32
    return %c0_i32, %c0_i32_0 : i32, i32
  }
  func.func @transform_2(%arg0: i32, %arg1: i32) -> (i32, i32) {
    %c0_i32 = arith.constant 0 : i32
    %c0_i32_0 = arith.constant 0 : i32
    %c0_i32_1 = arith.constant 0 : i32
    return %c0_i32, %c0_i32_0 : i32, i32
  }
  func.func @transform_3(%arg0: i32, %arg1: i32) -> (i32, i32) {
    %c0_i32 = arith.constant 0 : i32
    %c0_i32_0 = arith.constant 0 : i32
    %c0_i32_1 = arith.constant 0 : i32
    return %c0_i32, %c0_i32_0 : i32, i32
  }
  func.func @transform_4(%arg0: i32, %arg1: i32) -> (i32, i32) {
    %c0_i32 = arith.constant 0 : i32
    %c0_i32_0 = arith.constant 0 : i32
    %c0_i32_1 = arith.constant 0 : i32
    return %c0_i32, %c0_i32_0 : i32, i32
  }
  func.func @transform_5(%arg0: i32, %arg1: i32) -> (i32, i32) {
    %c0_i32 = arith.constant 0 : i32
    %c0_i32_0 = arith.constant 0 : i32
    %c0_i32_1 = arith.constant 0 : i32
    return %c0_i32, %c0_i32_0 : i32, i32
  }
  func.func @transform_6(%arg0: i32, %arg1: i32) -> (i32, i32) {
    %c0_i32 = arith.constant 0 : i32
    %c0_i32_0 = arith.constant 0 : i32
    return %arg0, %c0_i32 : i32, i32
  }
  func.func @transform_7(%arg0: i32, %arg1: i32) -> (i32, i32) {
    %c0_i32 = arith.constant 0 : i32
    %c0_i32_0 = arith.constant 0 : i32
    return %arg0, %c0_i32 : i32, i32
  }
}

</mosaic_0001>

<llo_original>
// kernel: gnn_backbone_forward.2
$region0: #{gnn_backbone_forward.2}
  #allocation0 [shape = 'u32[]', space=smem, size = 0x4, offset = 0x4, fixed_abs, tag = 'smem constant byte address 0x4 - core index']
  #allocation1 [shape = 'u32[72,128]{1,0:T(1,128)}', space=vmem, size = 0x9000, scoped, tag = 'internal scratch']
  #allocation2 [shape = 'f32[128,128]{1,0:T(8,128)}', space=vmem, size = 0x10000, scoped, tag = 'scratch operand']
  %s0 = inlined_call_operand.vmem [shape: bf16[128,128], index: 0, kind: input, shape index: {}]
  %s1 = inlined_call_operand.vmem [shape: bf16[128,128], index: 1, kind: input, shape index: {}]
  %s2 = inlined_call_operand.vmem [shape: bf16[128,128], index: 2, kind: input, shape index: {}]
  %s3 = inlined_call_operand.vmem [shape: f32[1,128], index: 3, kind: input, shape index: {}]
  %s4 = inlined_call_operand.vmem [shape: bf16[128,128], index: 4, kind: output, shape index: {}]
  %s5 = sld [smem:[#allocation0]]
  $region34: #{gnn_backbone_forward.2} parent=0
    _
  %s7 = ssub.s32 1, %s5
  %s8 = scalar_select 0, %s7, %s5
  // Predicated region
  $region2: #{gnn_backbone_forward.2} parent=0 // pred_check
    _
  $region3: #{gnn_backbone_forward.2} parent=0 // pred_check_branch
    %10 = sbr.rel (0) target = $region5
  $region4: #{gnn_backbone_forward.2} parent=0 // pred_region
    _
  $region5: #{gnn_backbone_forward.2} parent=0 // pred_fallthru
    _
  // Predicated region
  $region6: #{gnn_backbone_forward.2} parent=0 // pred_check
    _
  $region7: #{gnn_backbone_forward.2} parent=0 // pred_check_branch
    %12 = sbr.rel (0) target = $region9
  $region8: #{gnn_backbone_forward.2} parent=0 // pred_region
    _
  $region9: #{gnn_backbone_forward.2} parent=0 // pred_fallthru
    _
  // Predicated region
  $region10: #{gnn_backbone_forward.2} parent=0 // pred_check
    _
  $region11: #{gnn_backbone_forward.2} parent=0 // pred_check_branch
    %14 = sbr.rel (0) target = $region13
  $region12: #{gnn_backbone_forward.2} parent=0 // pred_region
    _
  $region13: #{gnn_backbone_forward.2} parent=0 // pred_fallthru
    _
  // Predicated region
  $region14: #{gnn_backbone_forward.2} parent=0 // pred_check
    _
  $region15: #{gnn_backbone_forward.2} parent=0 // pred_check_branch
    %16 = sbr.rel (0) target = $region17
  $region16: #{gnn_backbone_forward.2} parent=0 // pred_region
    _
  $region17: #{gnn_backbone_forward.2} parent=0 // pred_fallthru
    _
  %p17 = scmp.eq.s32.totalorder 0, 0
  // Predicated region
  $region18: #{gnn_backbone_forward.2} parent=0 // pred_check
    %p18 = pneg %p17
  $region19: #{gnn_backbone_forward.2} parent=0 // pred_check_branch
    %20 = sbr.rel (%p18) target = $region21
  $region20: #{gnn_backbone_forward.2} parent=0 // pred_region
    %21 = vst [vmem:[#allocation2] sm:$0xff] 0.0
    %22 = vst [vmem:[#allocation2 + $0x8] sm:$0xff] 0.0
    %23 = vst [vmem:[#allocation2 + $0x10] sm:$0xff] 0.0
    %24 = vst [vmem:[#allocation2 + $0x18] sm:$0xff] 0.0
    %25 = vst [vmem:[#allocation2 + $0x20] sm:$0xff] 0.0
    %26 = vst [vmem:[#allocation2 + $0x28] sm:$0xff] 0.0
    %27 = vst [vmem:[#allocation2 + $0x30] sm:$0xff] 0.0
    %28 = vst [vmem:[#allocation2 + $0x38] sm:$0xff] 0.0
    %29 = vst [vmem:[#allocation2 + $0x40] sm:$0xff] 0.0
    %30 = vst [vmem:[#allocation2 + $0x48] sm:$0xff] 0.0
    %31 = vst [vmem:[#allocation2 + $0x50] sm:$0xff] 0.0
    %32 = vst [vmem:[#allocation2 + $0x58] sm:$0xff] 0.0
    %33 = vst [vmem:[#allocation2 + $0x60] sm:$0xff] 0.0
    %34 = vst [vmem:[#allocation2 + $0x68] sm:$0xff] 0.0
    %35 = vst [vmem:[#allocation2 + $0x70] sm:$0xff] 0.0
    %36 = vst [vmem:[#allocation2 + $0x78] sm:$0xff] 0.0
  $region21: #{gnn_backbone_forward.2} parent=0 // pred_fallthru
    _
  %s37 = smul.u32 0, 128
  %s38 = sshra.s32 %s37, 3
  %s39 = sand.u32 %s37, 7
  %s40 = smul.addr %s38, 4
  %s41 = scalar_lea.vmem %s1, %s40
  %v42 = vld [vmem:[%s41] sm:$0xf]
  %v43 = vld [vmem:[%s41 + $0x4] sm:$0xf]
  %v44 = vld [vmem:[%s41 + $0x8] sm:$0xf]
  %v45 = vld [vmem:[%s41 + $0xc] sm:$0xf]
  %v46 = vld [vmem:[%s41 + $0x10] sm:$0xf]
  %v47 = vld [vmem:[%s41 + $0x14] sm:$0xf]
  %v48 = vld [vmem:[%s41 + $0x18] sm:$0xf]
  %v49 = vld [vmem:[%s41 + $0x1c] sm:$0xf]
  %v50 = vld [vmem:[%s41 + $0x20] sm:$0xf]
  %v51 = vld [vmem:[%s41 + $0x24] sm:$0xf]
  %v52 = vld [vmem:[%s41 + $0x28] sm:$0xf]
  %v53 = vld [vmem:[%s41 + $0x2c] sm:$0xf]
  %v54 = vld [vmem:[%s41 + $0x30] sm:$0xf]
  %v55 = vld [vmem:[%s41 + $0x34] sm:$0xf]
  %v56 = vld [vmem:[%s41 + $0x38] sm:$0xf]
  %v57 = vld [vmem:[%s41 + $0x3c] sm:$0xf]
  %v58 = vld [vmem:[%s2] sm:$0xf]
  %v59 = vld [vmem:[%s2 + $0x4] sm:$0xf]
  %v60 = vld [vmem:[%s2 + $0x8] sm:$0xf]
  %v61 = vld [vmem:[%s2 + $0xc] sm:$0xf]
  %v62 = vld [vmem:[%s2 + $0x10] sm:$0xf]
  %v63 = vld [vmem:[%s2 + $0x14] sm:$0xf]
  %v64 = vld [vmem:[%s2 + $0x18] sm:$0xf]
  %v65 = vld [vmem:[%s2 + $0x1c] sm:$0xf]
  %v66 = vld [vmem:[%s2 + $0x20] sm:$0xf]
  %v67 = vld [vmem:[%s2 + $0x24] sm:$0xf]
  %v68 = vld [vmem:[%s2 + $0x28] sm:$0xf]
  %v69 = vld [vmem:[%s2 + $0x2c] sm:$0xf]
  %v70 = vld [vmem:[%s2 + $0x30] sm:$0xf]
  %v71 = vld [vmem:[%s2 + $0x34] sm:$0xf]
  %v72 = vld [vmem:[%s2 + $0x38] sm:$0xf]
  %v73 = vld [vmem:[%s2 + $0x3c] sm:$0xf]
  %v90 = vunpack.c.l.b16 %v42
  %v91 = vunpack.c.l.b16 %v43
  %v92 = vunpack.c.l.b16 %v44
  %v93 = vunpack.c.l.b16 %v45
  %v94 = vunpack.c.l.b16 %v46
  %v95 = vunpack.c.l.b16 %v47
  %v96 = vunpack.c.l.b16 %v48
  %v97 = vunpack.c.l.b16 %v49
  %v98 = vunpack.c.l.b16 %v50
  %v99 = vunpack.c.l.b16 %v51
  %v100 = vunpack.c.l.b16 %v52
  %v101 = vunpack.c.l.b16 %v53
  %v102 = vunpack.c.l.b16 %v54
  %v103 = vunpack.c.l.b16 %v55
  %v104 = vunpack.c.l.b16 %v56
  %v105 = vunpack.c.l.b16 %v57
  %v106 = vpack.c.b16 %v91, %v90
  %v107 = vpack.c.b16 %v93, %v92
  %v108 = vpack.c.b16 %v95, %v94
  %v109 = vpack.c.b16 %v97, %v96
  %v110 = vpack.c.b16 %v99, %v98
  %v111 = vpack.c.b16 %v101, %v100
  %v112 = vpack.c.b16 %v103, %v102
  %v113 = vpack.c.b16 %v105, %v104
  %v138 = vunpack.c.l.b16 %v58
  %v139 = vunpack.c.l.b16 %v59
  %v140 = vunpack.c.l.b16 %v60
  %v141 = vunpack.c.l.b16 %v61
  %v142 = vunpack.c.l.b16 %v62
  %v143 = vunpack.c.l.b16 %v63
  %v144 = vunpack.c.l.b16 %v64
  %v145 = vunpack.c.l.b16 %v65
  %v146 = vunpack.c.l.b16 %v66
  %v147 = vunpack.c.l.b16 %v67
  %v148 = vunpack.c.l.b16 %v68
  %v149 = vunpack.c.l.b16 %v69
  %v150 = vunpack.c.l.b16 %v70
  %v151 = vunpack.c.l.b16 %v71
  %v152 = vunpack.c.l.b16 %v72
  %v153 = vunpack.c.l.b16 %v73
  %v154 = vpack.c.b16 %v139, %v138
  %v155 = vpack.c.b16 %v141, %v140
  %v156 = vpack.c.b16 %v143, %v142
  %v157 = vpack.c.b16 %v145, %v144
  %v158 = vpack.c.b16 %v147, %v146
  %v159 = vpack.c.b16 %v149, %v148
  %v160 = vpack.c.b16 %v151, %v150
  %v161 = vpack.c.b16 %v153, %v152
  %170 = vmatpush.bf16.msra.mxu0 %v161
  %171 = vmatpush.bf16.msra.mxu0 %v160
  %172 = vmatpush.bf16.msra.mxu0 %v159
  %173 = vmatpush.bf16.msra.mxu0 %v158
  %174 = vmatpush.bf16.msra.mxu0 %v157
  %175 = vmatpush.bf16.msra.mxu0 %v156
  %176 = vmatpush.bf16.msra.mxu0 %v155
  %177 = vmatpush.bf16.msra.mxu0 %v154
  %178 = vmatmul.bf16.gmra.mxu0 %v106
  %v179 = vpop.f32.mrf.mxu0
  %v180 = vadd.f32 0.0, %v179
  %v181 = vpop.f32.mrf.mxu0
  %v182 = vadd.f32 0.0, %v181
  %183 = vmatmul.bf16.gmra.mxu0 %v107
  %v184 = vpop.f32.mrf.mxu0
  %v185 = vadd.f32 0.0, %v184
  %v186 = vpop.f32.mrf.mxu0
  %v187 = vadd.f32 0.0, %v186
  %188 = vmatmul.bf16.gmra.mxu0 %v108
  %v189 = vpop.f32.mrf.mxu0
  %v190 = vadd.f32 0.0, %v189
  %v191 = vpop.f32.mrf.mxu0
  %v192 = vadd.f32 0.0, %v191
  %193 = vmatmul.bf16.gmra.mxu0 %v109
  %v194 = vpop.f32.mrf.mxu0
  %v195 = vadd.f32 0.0, %v194
  %v196 = vpop.f32.mrf.mxu0
  %v197 = vadd.f32 0.0, %v196
  %198 = vmatmul.bf16.gmra.mxu0 %v110
  %v199 = vpop.f32.mrf.mxu0
  %v200 = vadd.f32 0.0, %v199
  %v201 = vpop.f32.mrf.mxu0
  %v202 = vadd.f32 0.0, %v201
  %203 = vmatmul.bf16.gmra.mxu0 %v111
  %v204 = vpop.f32.mrf.mxu0
  %v205 = vadd.f32 0.0, %v204
  %v206 = vpop.f32.mrf.mxu0
  %v207 = vadd.f32 0.0, %v206
  %208 = vmatmul.bf16.gmra.mxu0 %v112
  %v209 = vpop.f32.mrf.mxu0
  %v210 = vadd.f32 0.0, %v209
  %v211 = vpop.f32.mrf.mxu0
  %v212 = vadd.f32 0.0, %v211
  %213 = vmatmul.bf16.gmra.mxu0 %v113
  %v214 = vpop.f32.mrf.mxu0
  %v215 = vadd.f32 0.0, %v214
  %v216 = vpop.f32.mrf.mxu0
  %v217 = vadd.f32 0.0, %v216
  %218 = vdwg.mxu0
  %v219 = vld [vmem:[#allocation2] sm:$0xff]
  %v220 = vld [vmem:[#allocation2 + $0x8] sm:$0xff]
  %v221 = vld [vmem:[#allocation2 + $0x10] sm:$0xff]
  %v222 = vld [vmem:[#allocation2 + $0x18] sm:$0xff]
  %v223 = vld [vmem:[#allocation2 + $0x20] sm:$0xff]
  %v224 = vld [vmem:[#allocation2 + $0x28] sm:$0xff]
  %v225 = vld [vmem:[#allocation2 + $0x30] sm:$0xff]
  %v226 = vld [vmem:[#allocation2 + $0x38] sm:$0xff]
  %v227 = vld [vmem:[#allocation2 + $0x40] sm:$0xff]
  %v228 = vld [vmem:[#allocation2 + $0x48] sm:$0xff]
  %v229 = vld [vmem:[#allocation2 + $0x50] sm:$0xff]
  %v230 = vld [vmem:[#allocation2 + $0x58] sm:$0xff]
  %v231 = vld [vmem:[#allocation2 + $0x60] sm:$0xff]
  %v232 = vld [vmem:[#allocation2 + $0x68] sm:$0xff]
  %v233 = vld [vmem:[#allocation2 + $0x70] sm:$0xff]
  %v234 = vld [vmem:[#allocation2 + $0x78] sm:$0xff]
  %v235 = vld [vmem:[%s0] sm:$0xf]
  %v236 = vld [vmem:[%s0 + $0x4] sm:$0xf]
  %v237 = vld [vmem:[%s0 + $0x8] sm:$0xf]
  %v238 = vld [vmem:[%s0 + $0xc] sm:$0xf]
  %v239 = vld [vmem:[%s0 + $0x10] sm:$0xf]
  %v240 = vld [vmem:[%s0 + $0x14] sm:$0xf]
  %v241 = vld [vmem:[%s0 + $0x18] sm:$0xf]
  %v242 = vld [vmem:[%s0 + $0x1c] sm:$0xf]
  %v243 = vld [vmem:[%s0 + $0x20] sm:$0xf]
  %v244 = vld [vmem:[%s0 + $0x24] sm:$0xf]
  %v245 = vld [vmem:[%s0 + $0x28] sm:$0xf]
  %v246 = vld [vmem:[%s0 + $0x2c] sm:$0xf]
  %v247 = vld [vmem:[%s0 + $0x30] sm:$0xf]
  %v248 = vld [vmem:[%s0 + $0x34] sm:$0xf]
  %v249 = vld [vmem:[%s0 + $0x38] sm:$0xf]
  %v250 = vld [vmem:[%s0 + $0x3c] sm:$0xf]
  %v251 = vpack.c.bf16 %v182, %v180
  %v252 = vpack.c.bf16 %v187, %v185
  %v253 = vpack.c.bf16 %v192, %v190
  %v254 = vpack.c.bf16 %v197, %v195
  %v255 = vpack.c.bf16 %v202, %v200
  %v256 = vpack.c.bf16 %v207, %v205
  %v257 = vpack.c.bf16 %v212, %v210
  %v258 = vpack.c.bf16 %v217, %v215
  %v275 = vunpack.c.l.b16 %v235
  %v276 = vunpack.c.l.b16 %v236
  %v277 = vunpack.c.l.b16 %v237
  %v278 = vunpack.c.l.b16 %v238
  %v279 = vunpack.c.l.b16 %v239
  %v280 = vunpack.c.l.b16 %v240
  %v281 = vunpack.c.l.b16 %v241
  %v282 = vunpack.c.l.b16 %v242
  %v283 = vunpack.c.l.b16 %v243
  %v284 = vunpack.c.l.b16 %v244
  %v285 = vunpack.c.l.b16 %v245
  %v286 = vunpack.c.l.b16 %v246
  %v287 = vunpack.c.l.b16 %v247
  %v288 = vunpack.c.l.b16 %v248
  %v289 = vunpack.c.l.b16 %v249
  %v290 = vunpack.c.l.b16 %v250
  %v291 = vpack.c.b16 %v276, %v275
  %v292 = vpack.c.b16 %v278, %v277
  %v293 = vpack.c.b16 %v280, %v279
  %v294 = vpack.c.b16 %v282, %v281
  %v295 = vpack.c.b16 %v284, %v283
  %v296 = vpack.c.b16 %v286, %v285
  %v297 = vpack.c.b16 %v288, %v287
  %v298 = vpack.c.b16 %v290, %v289
  %307 = vmatpush.bf16.msra.mxu0 %v258
  %308 = vmatpush.bf16.msra.mxu0 %v257
  %309 = vmatpush.bf16.msra.mxu0 %v256
  %310 = vmatpush.bf16.msra.mxu0 %v255
  %311 = vmatpush.bf16.msra.mxu0 %v254
  %312 = vmatpush.bf16.msra.mxu0 %v253
  %313 = vmatpush.bf16.msra.mxu0 %v252
  %314 = vmatpush.bf16.msra.mxu0 %v251
  %315 = vmatmul.bf16.gmra.mxu0 %v291
  %v316 = vpop.f32.mrf.mxu0
  %v317 = vadd.f32 0.0, %v316
  %v318 = vpop.f32.mrf.mxu0
  %v319 = vadd.f32 0.0, %v318
  %320 = vmatmul.bf16.gmra.mxu0 %v292
  %v321 = vpop.f32.mrf.mxu0
  %v322 = vadd.f32 0.0, %v321
  %v323 = vpop.f32.mrf.mxu0
  %v324 = vadd.f32 0.0, %v323
  %325 = vmatmul.bf16.gmra.mxu0 %v293
  %v326 = vpop.f32.mrf.mxu0
  %v327 = vadd.f32 0.0, %v326
  %v328 = vpop.f32.mrf.mxu0
  %v329 = vadd.f32 0.0, %v328
  %330 = vmatmul.bf16.gmra.mxu0 %v294
  %v331 = vpop.f32.mrf.mxu0
  %v332 = vadd.f32 0.0, %v331
  %v333 = vpop.f32.mrf.mxu0
  %v334 = vadd.f32 0.0, %v333
  %335 = vmatmul.bf16.gmra.mxu0 %v295
  %v336 = vpop.f32.mrf.mxu0
  %v337 = vadd.f32 0.0, %v336
  %v338 = vpop.f32.mrf.mxu0
  %v339 = vadd.f32 0.0, %v338
  %340 = vmatmul.bf16.gmra.mxu0 %v296
  %v341 = vpop.f32.mrf.mxu0
  %v342 = vadd.f32 0.0, %v341
  %v343 = vpop.f32.mrf.mxu0
  %v344 = vadd.f32 0.0, %v343
  %345 = vmatmul.bf16.gmra.mxu0 %v297
  %v346 = vpop.f32.mrf.mxu0
  %v347 = vadd.f32 0.0, %v346
  %v348 = vpop.f32.mrf.mxu0
  %v349 = vadd.f32 0.0, %v348
  %350 = vmatmul.bf16.gmra.mxu0 %v298
  %v351 = vpop.f32.mrf.mxu0
  %v352 = vadd.f32 0.0, %v351
  %v353 = vpop.f32.mrf.mxu0
  %v354 = vadd.f32 0.0, %v353
  %355 = vdwg.mxu0
  %v356 = vadd.f32 %v219, %v317
  %v357 = vadd.f32 %v220, %v319
  %v358 = vadd.f32 %v221, %v322
  %v359 = vadd.f32 %v222, %v324
  %v360 = vadd.f32 %v223, %v327
  %v361 = vadd.f32 %v224, %v329
  %v362 = vadd.f32 %v225, %v332
  %v363 = vadd.f32 %v226, %v334
  %v364 = vadd.f32 %v227, %v337
  %v365 = vadd.f32 %v228, %v339
  %v366 = vadd.f32 %v229, %v342
  %v367 = vadd.f32 %v230, %v344
  %v368 = vadd.f32 %v231, %v347
  %v369 = vadd.f32 %v232, %v349
  %v370 = vadd.f32 %v233, %v352
  %v371 = vadd.f32 %v234, %v354
  %372 = vst [vmem:[#allocation2] sm:$0xff] %v356
  %373 = vst [vmem:[#allocation2 + $0x8] sm:$0xff] %v357
  %374 = vst [vmem:[#allocation2 + $0x10] sm:$0xff] %v358
  %375 = vst [vmem:[#allocation2 + $0x18] sm:$0xff] %v359
  %376 = vst [vmem:[#allocation2 + $0x20] sm:$0xff] %v360
  %377 = vst [vmem:[#allocation2 + $0x28] sm:$0xff] %v361
  %378 = vst [vmem:[#allocation2 + $0x30] sm:$0xff] %v362
  %379 = vst [vmem:[#allocation2 + $0x38] sm:$0xff] %v363
  %380 = vst [vmem:[#allocation2 + $0x40] sm:$0xff] %v364
  %381 = vst [vmem:[#allocation2 + $0x48] sm:$0xff] %v365
  %382 = vst [vmem:[#allocation2 + $0x50] sm:$0xff] %v366
  %383 = vst [vmem:[#allocation2 + $0x58] sm:$0xff] %v367
  %384 = vst [vmem:[#allocation2 + $0x60] sm:$0xff] %v368
  %385 = vst [vmem:[#allocation2 + $0x68] sm:$0xff] %v369
  %386 = vst [vmem:[#allocation2 + $0x70] sm:$0xff] %v370
  %387 = vst [vmem:[#allocation2 + $0x78] sm:$0xff] %v371
  // Predicated region
  $region22: #{gnn_backbone_forward.2} parent=0 // pred_check
    %p388 = pneg %p17
  $region23: #{gnn_backbone_forward.2} parent=0 // pred_check_branch
    %390 = sbr.rel (%p388) target = $region25
  $region24: #{gnn_backbone_forward.2} parent=0 // pred_region
    %v391 = vld [vmem:[#allocation2] sm:$0xff]
    %v392 = vld [vmem:[#allocation2 + $0x8] sm:$0xff]
    %v393 = vld [vmem:[#allocation2 + $0x10] sm:$0xff]
    %v394 = vld [vmem:[#allocation2 + $0x18] sm:$0xff]
    %v395 = vld [vmem:[#allocation2 + $0x20] sm:$0xff]
    %v396 = vld [vmem:[#allocation2 + $0x28] sm:$0xff]
    %v397 = vld [vmem:[#allocation2 + $0x30] sm:$0xff]
    %v398 = vld [vmem:[#allocation2 + $0x38] sm:$0xff]
    %v399 = vld [vmem:[#allocation2 + $0x40] sm:$0xff]
    %v400 = vld [vmem:[#allocation2 + $0x48] sm:$0xff]
    %v401 = vld [vmem:[#allocation2 + $0x50] sm:$0xff]
    %v402 = vld [vmem:[#allocation2 + $0x58] sm:$0xff]
    %v403 = vld [vmem:[#allocation2 + $0x60] sm:$0xff]
    %v404 = vld [vmem:[#allocation2 + $0x68] sm:$0xff]
    %v405 = vld [vmem:[#allocation2 + $0x70] sm:$0xff]
    %v406 = vld [vmem:[#allocation2 + $0x78] sm:$0xff]
    %v407 = vld [vmem:[%s3] sm:$0x1]
    %v409 = vperm.slane %v407, 0
    %v411 = vadd.f32 %v391, %v409
    %v412 = vadd.f32 %v392, %v409
    %v413 = vadd.f32 %v393, %v409
    %v414 = vadd.f32 %v394, %v409
    %v415 = vadd.f32 %v395, %v409
    %v416 = vadd.f32 %v396, %v409
    %v417 = vadd.f32 %v397, %v409
    %v418 = vadd.f32 %v398, %v409
    %v419 = vadd.f32 %v399, %v409
    %v420 = vadd.f32 %v400, %v409
    %v421 = vadd.f32 %v401, %v409
    %v422 = vadd.f32 %v402, %v409
    %v423 = vadd.f32 %v403, %v409
    %v424 = vadd.f32 %v404, %v409
    %v425 = vadd.f32 %v405, %v409
    %v426 = vadd.f32 %v406, %v409
    %v427 = vmax.f32 %v411, 0.0
    %v428 = vmax.f32 %v412, 0.0
    %v429 = vmax.f32 %v413, 0.0
    %v430 = vmax.f32 %v414, 0.0
    %v431 = vmax.f32 %v415, 0.0
    %v432 = vmax.f32 %v416, 0.0
    %v433 = vmax.f32 %v417, 0.0
    %v434 = vmax.f32 %v418, 0.0
    %v435 = vmax.f32 %v419, 0.0
    %v436 = vmax.f32 %v420, 0.0
    %v437 = vmax.f32 %v421, 0.0
    %v438 = vmax.f32 %v422, 0.0
    %v439 = vmax.f32 %v423, 0.0
    %v440 = vmax.f32 %v424, 0.0
    %v441 = vmax.f32 %v425, 0.0
    %v442 = vmax.f32 %v426, 0.0
    %v443 = vpack.c.bf16 %v427, %v427
    %v444 = vpack.c.bf16 %v428, %v428
    %v445 = vpack.c.bf16 %v429, %v429
    %v446 = vpack.c.bf16 %v430, %v430
    %v447 = vpack.c.bf16 %v431, %v431
    %v448 = vpack.c.bf16 %v432, %v432
    %v449 = vpack.c.bf16 %v433, %v433
    %v450 = vpack.c.bf16 %v434, %v434
    %v451 = vpack.c.bf16 %v435, %v435
    %v452 = vpack.c.bf16 %v436, %v436
    %v453 = vpack.c.bf16 %v437, %v437
    %v454 = vpack.c.bf16 %v438, %v438
    %v455 = vpack.c.bf16 %v439, %v439
    %v456 = vpack.c.bf16 %v440, %v440
    %v457 = vpack.c.bf16 %v441, %v441
    %v458 = vpack.c.bf16 %v442, %v442
    %459 = vst [vmem:[%s4] sm:$0xf] %v443
    %460 = vst [vmem:[%s4 + $0x4] sm:$0xf] %v444
    %461 = vst [vmem:[%s4 + $0x8] sm:$0xf] %v445
    %462 = vst [vmem:[%s4 + $0xc] sm:$0xf] %v446
    %463 = vst [vmem:[%s4 + $0x10] sm:$0xf] %v447
    %464 = vst [vmem:[%s4 + $0x14] sm:$0xf] %v448
    %465 = vst [vmem:[%s4 + $0x18] sm:$0xf] %v449
    %466 = vst [vmem:[%s4 + $0x1c] sm:$0xf] %v450
    %467 = vst [vmem:[%s4 + $0x20] sm:$0xf] %v451
    %468 = vst [vmem:[%s4 + $0x24] sm:$0xf] %v452
    %469 = vst [vmem:[%s4 + $0x28] sm:$0xf] %v453
    %470 = vst [vmem:[%s4 + $0x2c] sm:$0xf] %v454
    %471 = vst [vmem:[%s4 + $0x30] sm:$0xf] %v455
    %472 = vst [vmem:[%s4 + $0x34] sm:$0xf] %v456
    %473 = vst [vmem:[%s4 + $0x38] sm:$0xf] %v457
    %474 = vst [vmem:[%s4 + $0x3c] sm:$0xf] %v458
  $region25: #{gnn_backbone_forward.2} parent=0 // pred_fallthru
    _
  // Predicated region
  $region26: #{gnn_backbone_forward.2} parent=0 // pred_check
    _
  $region27: #{gnn_backbone_forward.2} parent=0 // pred_check_branch
    %476 = sbr.rel (0) target = $region29
  $region28: #{gnn_backbone_forward.2} parent=0 // pred_region
    _
  $region29: #{gnn_backbone_forward.2} parent=0 // pred_fallthru
    _
  // Predicated region
  $region30: #{gnn_backbone_forward.2} parent=0 // pred_check
    _
  $region31: #{gnn_backbone_forward.2} parent=0 // pred_check_branch
    %478 = sbr.rel (0) target = $region33
  $region32: #{gnn_backbone_forward.2} parent=0 // pred_region
    _
  $region33: #{gnn_backbone_forward.2} parent=0 // pred_fallthru
    _

// kernel: gnn_backbone_forward.3
$region0: #{gnn_backbone_forward.3}
  #allocation0 [shape = 'u32[]', space=smem, size = 0x4, offset = 0x4, fixed_abs, tag = 'smem constant byte address 0x4 - core index']
  #allocation1 [shape = 'u32[72,128]{1,0:T(1,128)}', space=vmem, size = 0x9000, scoped, tag = 'internal scratch']
  #allocation2 [shape = 'f32[128,128]{1,0:T(8,128)}', space=vmem, size = 0x10000, scoped, tag = 'scratch operand']
  %s0 = inlined_call_operand.vmem [shape: bf16[128,128], index: 0, kind: input, shape index: {}]
  %s1 = inlined_call_operand.vmem [shape: bf16[128,128], index: 1, kind: input, shape index: {}]
  %s2 = inlined_call_operand.vmem [shape: bf16[128,128], index: 2, kind: input, shape index: {}]
  %s3 = inlined_call_operand.vmem [shape: f32[1,128], index: 3, kind: input, shape index: {}]
  %s4 = inlined_call_operand.vmem [shape: f32[128,128], index: 4, kind: input, shape index: {}]
  %s5 = inlined_call_operand.vmem [shape: f32[1,128], index: 5, kind: input, shape index: {}]
  %s6 = inlined_call_operand.vmem [shape: f32[128,128], index: 6, kind: output, shape index: {0}]
  %s7 = inlined_call_operand.vmem [shape: f32[128,128], index: 7, kind: output, shape index: {1}]
  %8 = xla_tuple %s6, %s7
  %s9 = sld [smem:[#allocation0]]
  $region50: #{gnn_backbone_forward.3} parent=0
    _
  %s11 = ssub.s32 1, %s9
  %s12 = scalar_select 0, %s11, %s9
  // Predicated region
  $region2: #{gnn_backbone_forward.3} parent=0 // pred_check
    _
  $region3: #{gnn_backbone_forward.3} parent=0 // pred_check_branch
    %14 = sbr.rel (0) target = $region5
  $region4: #{gnn_backbone_forward.3} parent=0 // pred_region
    _
  $region5: #{gnn_backbone_forward.3} parent=0 // pred_fallthru
    _
  // Predicated region
  $region6: #{gnn_backbone_forward.3} parent=0 // pred_check
    _
  $region7: #{gnn_backbone_forward.3} parent=0 // pred_check_branch
    %16 = sbr.rel (0) target = $region9
  $region8: #{gnn_backbone_forward.3} parent=0 // pred_region
    _
  $region9: #{gnn_backbone_forward.3} parent=0 // pred_fallthru
    _
  // Predicated region
  $region10: #{gnn_backbone_forward.3} parent=0 // pred_check
    _
  $region11: #{gnn_backbone_forward.3} parent=0 // pred_check_branch
    %18 = sbr.rel (0) target = $region13
  $region12: #{gnn_backbone_forward.3} parent=0 // pred_region
    _
  $region13: #{gnn_backbone_forward.3} parent=0 // pred_fallthru
    _
  // Predicated region
  $region14: #{gnn_backbone_forward.3} parent=0 // pred_check
    _
  $region15: #{gnn_backbone_forward.3} parent=0 // pred_check_branch
    %20 = sbr.rel (0) target = $region17
  $region16: #{gnn_backbone_forward.3} parent=0 // pred_region
    _
  $region17: #{gnn_backbone_forward.3} parent=0 // pred_fallthru
    _
  // Predicated region
  $region18: #{gnn_backbone_forward.3} parent=0 // pred_check
    _
  $region19: #{gnn_backbone_forward.3} parent=0 // pred_check_branch
    %22 = sbr.rel (0) target = $region21
  $region20: #{gnn_backbone_forward.3} parent=0 // pred_region
    _
  $region21: #{gnn_backbone_forward.3} parent=0 // pred_fallthru
    _
  // Predicated region
  $region22: #{gnn_backbone_forward.3} parent=0 // pred_check
    _
  $region23: #{gnn_backbone_forward.3} parent=0 // pred_check_branch
    %24 = sbr.rel (0) target = $region25
  $region24: #{gnn_backbone_forward.3} parent=0 // pred_region
    _
  $region25: #{gnn_backbone_forward.3} parent=0 // pred_fallthru
    _
  %p25 = scmp.eq.s32.totalorder 0, 0
  // Predicated region
  $region26: #{gnn_backbone_forward.3} parent=0 // pred_check
    %p26 = pneg %p25
  $region27: #{gnn_backbone_forward.3} parent=0 // pred_check_branch
    %28 = sbr.rel (%p26) target = $region29
  $region28: #{gnn_backbone_forward.3} parent=0 // pred_region
    %29 = vst [vmem:[#allocation2] sm:$0xff] 0.0
    %30 = vst [vmem:[#allocation2 + $0x8] sm:$0xff] 0.0
    %31 = vst [vmem:[#allocation2 + $0x10] sm:$0xff] 0.0
    %32 = vst [vmem:[#allocation2 + $0x18] sm:$0xff] 0.0
    %33 = vst [vmem:[#allocation2 + $0x20] sm:$0xff] 0.0
    %34 = vst [vmem:[#allocation2 + $0x28] sm:$0xff] 0.0
    %35 = vst [vmem:[#allocation2 + $0x30] sm:$0xff] 0.0
    %36 = vst [vmem:[#allocation2 + $0x38] sm:$0xff] 0.0
    %37 = vst [vmem:[#allocation2 + $0x40] sm:$0xff] 0.0
    %38 = vst [vmem:[#allocation2 + $0x48] sm:$0xff] 0.0
    %39 = vst [vmem:[#allocation2 + $0x50] sm:$0xff] 0.0
    %40 = vst [vmem:[#allocation2 + $0x58] sm:$0xff] 0.0
    %41 = vst [vmem:[#allocation2 + $0x60] sm:$0xff] 0.0
    %42 = vst [vmem:[#allocation2 + $0x68] sm:$0xff] 0.0
    %43 = vst [vmem:[#allocation2 + $0x70] sm:$0xff] 0.0
    %44 = vst [vmem:[#allocation2 + $0x78] sm:$0xff] 0.0
  $region29: #{gnn_backbone_forward.3} parent=0 // pred_fallthru
    _
  %s45 = smul.u32 0, 128
  %s46 = sshra.s32 %s45, 3
  %s47 = sand.u32 %s45, 7
  %s48 = smul.addr %s46, 4
  %s49 = scalar_lea.vmem %s1, %s48
  %v50 = vld [vmem:[%s49] sm:$0xf]
  %v51 = vld [vmem:[%s49 + $0x4] sm:$0xf]
  %v52 = vld [vmem:[%s49 + $0x8] sm:$0xf]
  %v53 = vld [vmem:[%s49 + $0xc] sm:$0xf]
  %v54 = vld [vmem:[%s49 + $0x10] sm:$0xf]
  %v55 = vld [vmem:[%s49 + $0x14] sm:$0xf]
  %v56 = vld [vmem:[%s49 + $0x18] sm:$0xf]
  %v57 = vld [vmem:[%s49 + $0x1c] sm:$0xf]
  %v58 = vld [vmem:[%s49 + $0x20] sm:$0xf]
  %v59 = vld [vmem:[%s49 + $0x24] sm:$0xf]
  %v60 = vld [vmem:[%s49 + $0x28] sm:$0xf]
  %v61 = vld [vmem:[%s49 + $0x2c] sm:$0xf]
  %v62 = vld [vmem:[%s49 + $0x30] sm:$0xf]
  %v63 = vld [vmem:[%s49 + $0x34] sm:$0xf]
  %v64 = vld [vmem:[%s49 + $0x38] sm:$0xf]
  %v65 = vld [vmem:[%s49 + $0x3c] sm:$0xf]
  %v66 = vld [vmem:[%s2] sm:$0xf]
  %v67 = vld [vmem:[%s2 + $0x4] sm:$0xf]
  %v68 = vld [vmem:[%s2 + $0x8] sm:$0xf]
  %v69 = vld [vmem:[%s2 + $0xc] sm:$0xf]
  %v70 = vld [vmem:[%s2 + $0x10] sm:$0xf]
  %v71 = vld [vmem:[%s2 + $0x14] sm:$0xf]
  %v72 = vld [vmem:[%s2 + $0x18] sm:$0xf]
  %v73 = vld [vmem:[%s2 + $0x1c] sm:$0xf]
  %v74 = vld [vmem:[%s2 + $0x20] sm:$0xf]
  %v75 = vld [vmem:[%s2 + $0x24] sm:$0xf]
  %v76 = vld [vmem:[%s2 + $0x28] sm:$0xf]
  %v77 = vld [vmem:[%s2 + $0x2c] sm:$0xf]
  %v78 = vld [vmem:[%s2 + $0x30] sm:$0xf]
  %v79 = vld [vmem:[%s2 + $0x34] sm:$0xf]
  %v80 = vld [vmem:[%s2 + $0x38] sm:$0xf]
  %v81 = vld [vmem:[%s2 + $0x3c] sm:$0xf]
  %v98 = vunpack.c.l.b16 %v50
  %v99 = vunpack.c.l.b16 %v51
  %v100 = vunpack.c.l.b16 %v52
  %v101 = vunpack.c.l.b16 %v53
  %v102 = vunpack.c.l.b16 %v54
  %v103 = vunpack.c.l.b16 %v55
  %v104 = vunpack.c.l.b16 %v56
  %v105 = vunpack.c.l.b16 %v57
  %v106 = vunpack.c.l.b16 %v58
  %v107 = vunpack.c.l.b16 %v59
  %v108 = vunpack.c.l.b16 %v60
  %v109 = vunpack.c.l.b16 %v61
  %v110 = vunpack.c.l.b16 %v62
  %v111 = vunpack.c.l.b16 %v63
  %v112 = vunpack.c.l.b16 %v64
  %v113 = vunpack.c.l.b16 %v65
  %v114 = vpack.c.b16 %v99, %v98
  %v115 = vpack.c.b16 %v101, %v100
  %v116 = vpack.c.b16 %v103, %v102
  %v117 = vpack.c.b16 %v105, %v104
  %v118 = vpack.c.b16 %v107, %v106
  %v119 = vpack.c.b16 %v109, %v108
  %v120 = vpack.c.b16 %v111, %v110
  %v121 = vpack.c.b16 %v113, %v112
  %v146 = vunpack.c.l.b16 %v66
  %v147 = vunpack.c.l.b16 %v67
  %v148 = vunpack.c.l.b16 %v68
  %v149 = vunpack.c.l.b16 %v69
  %v150 = vunpack.c.l.b16 %v70
  %v151 = vunpack.c.l.b16 %v71
  %v152 = vunpack.c.l.b16 %v72
  %v153 = vunpack.c.l.b16 %v73
  %v154 = vunpack.c.l.b16 %v74
  %v155 = vunpack.c.l.b16 %v75
  %v156 = vunpack.c.l.b16 %v76
  %v157 = vunpack.c.l.b16 %v77
  %v158 = vunpack.c.l.b16 %v78
  %v159 = vunpack.c.l.b16 %v79
  %v160 = vunpack.c.l.b16 %v80
  %v161 = vunpack.c.l.b16 %v81
  %v162 = vpack.c.b16 %v147, %v146
  %v163 = vpack.c.b16 %v149, %v148
  %v164 = vpack.c.b16 %v151, %v150
  %v165 = vpack.c.b16 %v153, %v152
  %v166 = vpack.c.b16 %v155, %v154
  %v167 = vpack.c.b16 %v157, %v156
  %v168 = vpack.c.b16 %v159, %v158
  %v169 = vpack.c.b16 %v161, %v160
  %178 = vmatpush.bf16.msra.mxu0 %v169
  %179 = vmatpush.bf16.msra.mxu0 %v168
  %180 = vmatpush.bf16.msra.mxu0 %v167
  %181 = vmatpush.bf16.msra.mxu0 %v166
  %182 = vmatpush.bf16.msra.mxu0 %v165
  %183 = vmatpush.bf16.msra.mxu0 %v164
  %184 = vmatpush.bf16.msra.mxu0 %v163
  %185 = vmatpush.bf16.msra.mxu0 %v162
  %186 = vmatmul.bf16.gmra.mxu0 %v114
  %v187 = vpop.f32.mrf.mxu0
  %v188 = vadd.f32 0.0, %v187
  %v189 = vpop.f32.mrf.mxu0
  %v190 = vadd.f32 0.0, %v189
  %191 = vmatmul.bf16.gmra.mxu0 %v115
  %v192 = vpop.f32.mrf.mxu0
  %v193 = vadd.f32 0.0, %v192
  %v194 = vpop.f32.mrf.mxu0
  %v195 = vadd.f32 0.0, %v194
  %196 = vmatmul.bf16.gmra.mxu0 %v116
  %v197 = vpop.f32.mrf.mxu0
  %v198 = vadd.f32 0.0, %v197
  %v199 = vpop.f32.mrf.mxu0
  %v200 = vadd.f32 0.0, %v199
  %201 = vmatmul.bf16.gmra.mxu0 %v117
  %v202 = vpop.f32.mrf.mxu0
  %v203 = vadd.f32 0.0, %v202
  %v204 = vpop.f32.mrf.mxu0
  %v205 = vadd.f32 0.0, %v204
  %206 = vmatmul.bf16.gmra.mxu0 %v118
  %v207 = vpop.f32.mrf.mxu0
  %v208 = vadd.f32 0.0, %v207
  %v209 = vpop.f32.mrf.mxu0
  %v210 = vadd.f32 0.0, %v209
  %211 = vmatmul.bf16.gmra.mxu0 %v119
  %v212 = vpop.f32.mrf.mxu0
  %v213 = vadd.f32 0.0, %v212
  %v214 = vpop.f32.mrf.mxu0
  %v215 = vadd.f32 0.0, %v214
  %216 = vmatmul.bf16.gmra.mxu0 %v120
  %v217 = vpop.f32.mrf.mxu0
  %v218 = vadd.f32 0.0, %v217
  %v219 = vpop.f32.mrf.mxu0
  %v220 = vadd.f32 0.0, %v219
  %221 = vmatmul.bf16.gmra.mxu0 %v121
  %v222 = vpop.f32.mrf.mxu0
  %v223 = vadd.f32 0.0, %v222
  %v224 = vpop.f32.mrf.mxu0
  %v225 = vadd.f32 0.0, %v224
  %226 = vdwg.mxu0
  %v227 = vld [vmem:[#allocation2] sm:$0xff]
  %v228 = vld [vmem:[#allocation2 + $0x8] sm:$0xff]
  %v229 = vld [vmem:[#allocation2 + $0x10] sm:$0xff]
  %v230 = vld [vmem:[#allocation2 + $0x18] sm:$0xff]
  %v231 = vld [vmem:[#allocation2 + $0x20] sm:$0xff]
  %v232 = vld [vmem:[#allocation2 + $0x28] sm:$0xff]
  %v233 = vld [vmem:[#allocation2 + $0x30] sm:$0xff]
  %v234 = vld [vmem:[#allocation2 + $0x38] sm:$0xff]
  %v235 = vld [vmem:[#allocation2 + $0x40] sm:$0xff]
  %v236 = vld [vmem:[#allocation2 + $0x48] sm:$0xff]
  %v237 = vld [vmem:[#allocation2 + $0x50] sm:$0xff]
  %v238 = vld [vmem:[#allocation2 + $0x58] sm:$0xff]
  %v239 = vld [vmem:[#allocation2 + $0x60] sm:$0xff]
  %v240 = vld [vmem:[#allocation2 + $0x68] sm:$0xff]
  %v241 = vld [vmem:[#allocation2 + $0x70] sm:$0xff]
  %v242 = vld [vmem:[#allocation2 + $0x78] sm:$0xff]
  %v243 = vld [vmem:[%s0] sm:$0xf]
  %v244 = vld [vmem:[%s0 + $0x4] sm:$0xf]
  %v245 = vld [vmem:[%s0 + $0x8] sm:$0xf]
  %v246 = vld [vmem:[%s0 + $0xc] sm:$0xf]
  %v247 = vld [vmem:[%s0 + $0x10] sm:$0xf]
  %v248 = vld [vmem:[%s0 + $0x14] sm:$0xf]
  %v249 = vld [vmem:[%s0 + $0x18] sm:$0xf]
  %v250 = vld [vmem:[%s0 + $0x1c] sm:$0xf]
  %v251 = vld [vmem:[%s0 + $0x20] sm:$0xf]
  %v252 = vld [vmem:[%s0 + $0x24] sm:$0xf]
  %v253 = vld [vmem:[%s0 + $0x28] sm:$0xf]
  %v254 = vld [vmem:[%s0 + $0x2c] sm:$0xf]
  %v255 = vld [vmem:[%s0 + $0x30] sm:$0xf]
  %v256 = vld [vmem:[%s0 + $0x34] sm:$0xf]
  %v257 = vld [vmem:[%s0 + $0x38] sm:$0xf]
  %v258 = vld [vmem:[%s0 + $0x3c] sm:$0xf]
  %v259 = vpack.c.bf16 %v190, %v188
  %v260 = vpack.c.bf16 %v195, %v193
  %v261 = vpack.c.bf16 %v200, %v198
  %v262 = vpack.c.bf16 %v205, %v203
  %v263 = vpack.c.bf16 %v210, %v208
  %v264 = vpack.c.bf16 %v215, %v213
  %v265 = vpack.c.bf16 %v220, %v218
  %v266 = vpack.c.bf16 %v225, %v223
  %v283 = vunpack.c.l.b16 %v243
  %v284 = vunpack.c.l.b16 %v244
  %v285 = vunpack.c.l.b16 %v245
  %v286 = vunpack.c.l.b16 %v246
  %v287 = vunpack.c.l.b16 %v247
  %v288 = vunpack.c.l.b16 %v248
  %v289 = vunpack.c.l.b16 %v249
  %v290 = vunpack.c.l.b16 %v250
  %v291 = vunpack.c.l.b16 %v251
  %v292 = vunpack.c.l.b16 %v252
  %v293 = vunpack.c.l.b16 %v253
  %v294 = vunpack.c.l.b16 %v254
  %v295 = vunpack.c.l.b16 %v255
  %v296 = vunpack.c.l.b16 %v256
  %v297 = vunpack.c.l.b16 %v257
  %v298 = vunpack.c.l.b16 %v258
  %v299 = vpack.c.b16 %v284, %v283
  %v300 = vpack.c.b16 %v286, %v285
  %v301 = vpack.c.b16 %v288, %v287
  %v302 = vpack.c.b16 %v290, %v289
  %v303 = vpack.c.b16 %v292, %v291
  %v304 = vpack.c.b16 %v294, %v293
  %v305 = vpack.c.b16 %v296, %v295
  %v306 = vpack.c.b16 %v298, %v297
  %315 = vmatpush.bf16.msra.mxu0 %v266
  %316 = vmatpush.bf16.msra.mxu0 %v265
  %317 = vmatpush.bf16.msra.mxu0 %v264
  %318 = vmatpush.bf16.msra.mxu0 %v263
  %319 = vmatpush.bf16.msra.mxu0 %v262
  %320 = vmatpush.bf16.msra.mxu0 %v261
  %321 = vmatpush.bf16.msra.mxu0 %v260
  %322 = vmatpush.bf16.msra.mxu0 %v259
  %323 = vmatmul.bf16.gmra.mxu0 %v299
  %v324 = vpop.f32.mrf.mxu0
  %v325 = vadd.f32 0.0, %v324
  %v326 = vpop.f32.mrf.mxu0
  %v327 = vadd.f32 0.0, %v326
  %328 = vmatmul.bf16.gmra.mxu0 %v300
  %v329 = vpop.f32.mrf.mxu0
  %v330 = vadd.f32 0.0, %v329
  %v331 = vpop.f32.mrf.mxu0
  %v332 = vadd.f32 0.0, %v331
  %333 = vmatmul.bf16.gmra.mxu0 %v301
  %v334 = vpop.f32.mrf.mxu0
  %v335 = vadd.f32 0.0, %v334
  %v336 = vpop.f32.mrf.mxu0
  %v337 = vadd.f32 0.0, %v336
  %338 = vmatmul.bf16.gmra.mxu0 %v302
  %v339 = vpop.f32.mrf.mxu0
  %v340 = vadd.f32 0.0, %v339
  %v341 = vpop.f32.mrf.mxu0
  %v342 = vadd.f32 0.0, %v341
  %343 = vmatmul.bf16.gmra.mxu0 %v303
  %v344 = vpop.f32.mrf.mxu0
  %v345 = vadd.f32 0.0, %v344
  %v346 = vpop.f32.mrf.mxu0
  %v347 = vadd.f32 0.0, %v346
  %348 = vmatmul.bf16.gmra.mxu0 %v304
  %v349 = vpop.f32.mrf.mxu0
  %v350 = vadd.f32 0.0, %v349
  %v351 = vpop.f32.mrf.mxu0
  %v352 = vadd.f32 0.0, %v351
  %353 = vmatmul.bf16.gmra.mxu0 %v305
  %v354 = vpop.f32.mrf.mxu0
  %v355 = vadd.f32 0.0, %v354
  %v356 = vpop.f32.mrf.mxu0
  %v357 = vadd.f32 0.0, %v356
  %358 = vmatmul.bf16.gmra.mxu0 %v306
  %v359 = vpop.f32.mrf.mxu0
  %v360 = vadd.f32 0.0, %v359
  %v361 = vpop.f32.mrf.mxu0
  %v362 = vadd.f32 0.0, %v361
  %363 = vdwg.mxu0
  %v364 = vadd.f32 %v227, %v325
  %v365 = vadd.f32 %v228, %v327
  %v366 = vadd.f32 %v229, %v330
  %v367 = vadd.f32 %v230, %v332
  %v368 = vadd.f32 %v231, %v335
  %v369 = vadd.f32 %v232, %v337
  %v370 = vadd.f32 %v233, %v340
  %v371 = vadd.f32 %v234, %v342
  %v372 = vadd.f32 %v235, %v345
  %v373 = vadd.f32 %v236, %v347
  %v374 = vadd.f32 %v237, %v350
  %v375 = vadd.f32 %v238, %v352
  %v376 = vadd.f32 %v239, %v355
  %v377 = vadd.f32 %v240, %v357
  %v378 = vadd.f32 %v241, %v360
  %v379 = vadd.f32 %v242, %v362
  %380 = vst [vmem:[#allocation2] sm:$0xff] %v364
  %381 = vst [vmem:[#allocation2 + $0x8] sm:$0xff] %v365
  %382 = vst [vmem:[#allocation2 + $0x10] sm:$0xff] %v366
  %383 = vst [vmem:[#allocation2 + $0x18] sm:$0xff] %v367
  %384 = vst [vmem:[#allocation2 + $0x20] sm:$0xff] %v368
  %385 = vst [vmem:[#allocation2 + $0x28] sm:$0xff] %v369
  %386 = vst [vmem:[#allocation2 + $0x30] sm:$0xff] %v370
  %387 = vst [vmem:[#allocation2 + $0x38] sm:$0xff] %v371
  %388 = vst [vmem:[#allocation2 + $0x40] sm:$0xff] %v372
  %389 = vst [vmem:[#allocation2 + $0x48] sm:$0xff] %v373
  %390 = vst [vmem:[#allocation2 + $0x50] sm:$0xff] %v374
  %391 = vst [vmem:[#allocation2 + $0x58] sm:$0xff] %v375
  %392 = vst [vmem:[#allocation2 + $0x60] sm:$0xff] %v376
  %393 = vst [vmem:[#allocation2 + $0x68] sm:$0xff] %v377
  %394 = vst [vmem:[#allocation2 + $0x70] sm:$0xff] %v378
  %395 = vst [vmem:[#allocation2 + $0x78] sm:$0xff] %v379
  // Predicated region
  $region30: #{gnn_backbone_forward.3} parent=0 // pred_check
    %p396 = pneg %p25
  $region31: #{gnn_backbone_forward.3} parent=0 // pred_check_branch
    %398 = sbr.rel (%p396) target = $region33
  $region32: #{gnn_backbone_forward.3} parent=0 // pred_region
    %v399 = vld [vmem:[#allocation2] sm:$0xff]
    %v400 = vld [vmem:[#allocation2 + $0x8] sm:$0xff]
    %v401 = vld [vmem:[#allocation2 + $0x10] sm:$0xff]
    %v402 = vld [vmem:[#allocation2 + $0x18] sm:$0xff]
    %v403 = vld [vmem:[#allocation2 + $0x20] sm:$0xff]
    %v404 = vld [vmem:[#allocation2 + $0x28] sm:$0xff]
    %v405 = vld [vmem:[#allocation2 + $0x30] sm:$0xff]
    %v406 = vld [vmem:[#allocation2 + $0x38] sm:$0xff]
    %v407 = vld [vmem:[#allocation2 + $0x40] sm:$0xff]
    %v408 = vld [vmem:[#allocation2 + $0x48] sm:$0xff]
    %v409 = vld [vmem:[#allocation2 + $0x50] sm:$0xff]
    %v410 = vld [vmem:[#allocation2 + $0x58] sm:$0xff]
    %v411 = vld [vmem:[#allocation2 + $0x60] sm:$0xff]
    %v412 = vld [vmem:[#allocation2 + $0x68] sm:$0xff]
    %v413 = vld [vmem:[#allocation2 + $0x70] sm:$0xff]
    %v414 = vld [vmem:[#allocation2 + $0x78] sm:$0xff]
    %v415 = vld [vmem:[%s3] sm:$0x1]
    %v417 = vperm.slane %v415, 0
    %v419 = vadd.f32 %v399, %v417
    %v420 = vadd.f32 %v400, %v417
    %v421 = vadd.f32 %v401, %v417
    %v422 = vadd.f32 %v402, %v417
    %v423 = vadd.f32 %v403, %v417
    %v424 = vadd.f32 %v404, %v417
    %v425 = vadd.f32 %v405, %v417
    %v426 = vadd.f32 %v406, %v417
    %v427 = vadd.f32 %v407, %v417
    %v428 = vadd.f32 %v408, %v417
    %v429 = vadd.f32 %v409, %v417
    %v430 = vadd.f32 %v410, %v417
    %v431 = vadd.f32 %v411, %v417
    %v432 = vadd.f32 %v412, %v417
    %v433 = vadd.f32 %v413, %v417
    %v434 = vadd.f32 %v414, %v417
    %435 = vst [vmem:[%s6] sm:$0xff] %v419
    %436 = vst [vmem:[%s6 + $0x8] sm:$0xff] %v420
    %437 = vst [vmem:[%s6 + $0x10] sm:$0xff] %v421
    %438 = vst [vmem:[%s6 + $0x18] sm:$0xff] %v422
    %439 = vst [vmem:[%s6 + $0x20] sm:$0xff] %v423
    %440 = vst [vmem:[%s6 + $0x28] sm:$0xff] %v424
    %441 = vst [vmem:[%s6 + $0x30] sm:$0xff] %v425
    %442 = vst [vmem:[%s6 + $0x38] sm:$0xff] %v426
    %443 = vst [vmem:[%s6 + $0x40] sm:$0xff] %v427
    %444 = vst [vmem:[%s6 + $0x48] sm:$0xff] %v428
    %445 = vst [vmem:[%s6 + $0x50] sm:$0xff] %v429
    %446 = vst [vmem:[%s6 + $0x58] sm:$0xff] %v430
    %447 = vst [vmem:[%s6 + $0x60] sm:$0xff] %v431
    %448 = vst [vmem:[%s6 + $0x68] sm:$0xff] %v432
    %449 = vst [vmem:[%s6 + $0x70] sm:$0xff] %v433
    %450 = vst [vmem:[%s6 + $0x78] sm:$0xff] %v434
    %v451 = vmax.f32 %v419, 0.0
    %v452 = vmax.f32 %v420, 0.0
    %v453 = vmax.f32 %v421, 0.0
    %v454 = vmax.f32 %v422, 0.0
    %v455 = vmax.f32 %v423, 0.0
    %v456 = vmax.f32 %v424, 0.0
    %v457 = vmax.f32 %v425, 0.0
    %v458 = vmax.f32 %v426, 0.0
    %v459 = vmax.f32 %v427, 0.0
    %v460 = vmax.f32 %v428, 0.0
    %v461 = vmax.f32 %v429, 0.0
    %v462 = vmax.f32 %v430, 0.0
    %v463 = vmax.f32 %v431, 0.0
    %v464 = vmax.f32 %v432, 0.0
    %v465 = vmax.f32 %v433, 0.0
    %v466 = vmax.f32 %v434, 0.0
    %v467 = vld [vmem:[%s4] sm:$0xff]
    %v468 = vld [vmem:[%s4 + $0x8] sm:$0xff]
    %v469 = vld [vmem:[%s4 + $0x10] sm:$0xff]
    %v470 = vld [vmem:[%s4 + $0x18] sm:$0xff]
    %v471 = vld [vmem:[%s4 + $0x20] sm:$0xff]
    %v472 = vld [vmem:[%s4 + $0x28] sm:$0xff]
    %v473 = vld [vmem:[%s4 + $0x30] sm:$0xff]
    %v474 = vld [vmem:[%s4 + $0x38] sm:$0xff]
    %v475 = vld [vmem:[%s4 + $0x40] sm:$0xff]
    %v476 = vld [vmem:[%s4 + $0x48] sm:$0xff]
    %v477 = vld [vmem:[%s4 + $0x50] sm:$0xff]
    %v478 = vld [vmem:[%s4 + $0x58] sm:$0xff]
    %v479 = vld [vmem:[%s4 + $0x60] sm:$0xff]
    %v480 = vld [vmem:[%s4 + $0x68] sm:$0xff]
    %v481 = vld [vmem:[%s4 + $0x70] sm:$0xff]
    %v482 = vld [vmem:[%s4 + $0x78] sm:$0xff]
    %v483 = vld [vmem:[%s5] sm:$0x1]
    %v485 = vperm.slane %v483, 0
    %487 = vmatpush.msra.mxu0 %v482
    %488 = vmatpush.msra.mxu0 %v481
    %489 = vmatpush.msra.mxu0 %v480
    %490 = vmatpush.msra.mxu0 %v479
    %491 = vmatpush.msra.mxu0 %v478
    %492 = vmatpush.msra.mxu0 %v477
    %493 = vmatpush.msra.mxu0 %v476
    %494 = vmatpush.msra.mxu0 %v475
    %495 = vmatpush.msra.mxu0 %v474
    %496 = vmatpush.msra.mxu0 %v473
    %497 = vmatpush.msra.mxu0 %v472
    %498 = vmatpush.msra.mxu0 %v471
    %499 = vmatpush.msra.mxu0 %v470
    %500 = vmatpush.msra.mxu0 %v469
    %501 = vmatpush.msra.mxu0 %v468
    %502 = vmatpush.msra.mxu0 %v467
    %503 = vmatmul.f32.gmra.mxu0 %v451
    %v504 = vpop.f32.mrf.mxu0
    %v505 = vadd.f32 %v485, %v504
    %506 = vmatmul.f32.gmra.mxu0 %v452
    %v507 = vpop.f32.mrf.mxu0
    %v508 = vadd.f32 %v485, %v507
    %509 = vmatmul.f32.gmra.mxu0 %v453
    %v510 = vpop.f32.mrf.mxu0
    %v511 = vadd.f32 %v485, %v510
    %512 = vmatmul.f32.gmra.mxu0 %v454
    %v513 = vpop.f32.mrf.mxu0
    %v514 = vadd.f32 %v485, %v513
    %515 = vmatmul.f32.gmra.mxu0 %v455
    %v516 = vpop.f32.mrf.mxu0
    %v517 = vadd.f32 %v485, %v516
    %518 = vmatmul.f32.gmra.mxu0 %v456
    %v519 = vpop.f32.mrf.mxu0
    %v520 = vadd.f32 %v485, %v519
    %521 = vmatmul.f32.gmra.mxu0 %v457
    %v522 = vpop.f32.mrf.mxu0
    %v523 = vadd.f32 %v485, %v522
    %524 = vmatmul.f32.gmra.mxu0 %v458
    %v525 = vpop.f32.mrf.mxu0
    %v526 = vadd.f32 %v485, %v525
    %527 = vmatmul.f32.gmra.mxu0 %v459
    %v528 = vpop.f32.mrf.mxu0
    %v529 = vadd.f32 %v485, %v528
    %530 = vmatmul.f32.gmra.mxu0 %v460
    %v531 = vpop.f32.mrf.mxu0
    %v532 = vadd.f32 %v485, %v531
    %533 = vmatmul.f32.gmra.mxu0 %v461
    %v534 = vpop.f32.mrf.mxu0
    %v535 = vadd.f32 %v485, %v534
    %536 = vmatmul.f32.gmra.mxu0 %v462
    %v537 = vpop.f32.mrf.mxu0
    %v538 = vadd.f32 %v485, %v537
    %539 = vmatmul.f32.gmra.mxu0 %v463
    %v540 = vpop.f32.mrf.mxu0
    %v541 = vadd.f32 %v485, %v540
    %542 = vmatmul.f32.gmra.mxu0 %v464
    %v543 = vpop.f32.mrf.mxu0
    %v544 = vadd.f32 %v485, %v543
    %545 = vmatmul.f32.gmra.mxu0 %v465
    %v546 = vpop.f32.mrf.mxu0
    %v547 = vadd.f32 %v485, %v546
    %548 = vmatmul.f32.gmra.mxu0 %v466
    %v549 = vpop.f32.mrf.mxu0
    %v550 = vadd.f32 %v485, %v549
    %551 = vdwg.mxu0
    %v552 = vlaneseq
    %v553 = vand.u32 %v552, 127
    %vm554 = vcmp.lt.s32.totalorder %v553, 4
    %v555 = vsel %vm554, %v505, -inf
    %v556 = vsel %vm554, %v508, -inf
    %v557 = vsel %vm554, %v511, -inf
    %v558 = vsel %vm554, %v514, -inf
    %v559 = vsel %vm554, %v517, -inf
    %v560 = vsel %vm554, %v520, -inf
    %v561 = vsel %vm554, %v523, -inf
    %v562 = vsel %vm554, %v526, -inf
    %v563 = vsel %vm554, %v529, -inf
    %v564 = vsel %vm554, %v532, -inf
    %v565 = vsel %vm554, %v535, -inf
    %v566 = vsel %vm554, %v538, -inf
    %v567 = vsel %vm554, %v541, -inf
    %v568 = vsel %vm554, %v544, -inf
    %v569 = vsel %vm554, %v547, -inf
    %v570 = vsel %vm554, %v550, -inf
    %571 = vmax.xlane.f32.xlu0 %v555
    %v572 = vpop.xlane.xlu0 %571
    %573 = vmax.xlane.f32.xlu0 %v556
    %v574 = vpop.xlane.xlu0 %573
    %575 = vmax.xlane.f32.xlu0 %v557
    %v576 = vpop.xlane.xlu0 %575
    %577 = vmax.xlane.f32.xlu0 %v558
    %v578 = vpop.xlane.xlu0 %577
    %579 = vmax.xlane.f32.xlu0 %v559
    %v580 = vpop.xlane.xlu0 %579
    %581 = vmax.xlane.f32.xlu0 %v560
    %v582 = vpop.xlane.xlu0 %581
    %583 = vmax.xlane.f32.xlu0 %v561
    %v584 = vpop.xlane.xlu0 %583
    %585 = vmax.xlane.f32.xlu0 %v562
    %v586 = vpop.xlane.xlu0 %585
    %587 = vmax.xlane.f32.xlu0 %v563
    %v588 = vpop.xlane.xlu0 %587
    %589 = vmax.xlane.f32.xlu0 %v564
    %v590 = vpop.xlane.xlu0 %589
    %591 = vmax.xlane.f32.xlu0 %v565
    %v592 = vpop.xlane.xlu0 %591
    %593 = vmax.xlane.f32.xlu0 %v566
    %v594 = vpop.xlane.xlu0 %593
    %595 = vmax.xlane.f32.xlu0 %v567
    %v596 = vpop.xlane.xlu0 %595
    %597 = vmax.xlane.f32.xlu0 %v568
    %v598 = vpop.xlane.xlu0 %597
    %599 = vmax.xlane.f32.xlu0 %v569
    %v600 = vpop.xlane.xlu0 %599
    %601 = vmax.xlane.f32.xlu0 %v570
    %v602 = vpop.xlane.xlu0 %601
    %v603 = vsub.f32 %v555, %v572
    %v604 = vsub.f32 %v556, %v574
    %v605 = vsub.f32 %v557, %v576
    %v606 = vsub.f32 %v558, %v578
    %v607 = vsub.f32 %v559, %v580
    %v608 = vsub.f32 %v560, %v582
    %v609 = vsub.f32 %v561, %v584
    %v610 = vsub.f32 %v562, %v586
    %v611 = vsub.f32 %v563, %v588
    %v612 = vsub.f32 %v564, %v590
    %v613 = vsub.f32 %v565, %v592
    %v614 = vsub.f32 %v566, %v594
    %v615 = vsub.f32 %v567, %v596
    %v616 = vsub.f32 %v568, %v598
    %v617 = vsub.f32 %v569, %v600
    %v618 = vsub.f32 %v570, %v602
    %v619 = vmul.f32 %v603, 1.442695
    %v620 = vpow.pop %v619
    %v621 = vmul.f32 %v604, 1.442695
    %v622 = vpow.pop %v621
    %v623 = vmul.f32 %v605, 1.442695
    %v624 = vpow.pop %v623
    %v625 = vmul.f32 %v606, 1.442695
    %v626 = vpow.pop %v625
    %v627 = vmul.f32 %v607, 1.442695
    %v628 = vpow.pop %v627
    %v629 = vmul.f32 %v608, 1.442695
    %v630 = vpow.pop %v629
    %v631 = vmul.f32 %v609, 1.442695
    %v632 = vpow.pop %v631
    %v633 = vmul.f32 %v610, 1.442695
    %v634 = vpow.pop %v633
    %v635 = vmul.f32 %v611, 1.442695
    %v636 = vpow.pop %v635
    %v637 = vmul.f32 %v612, 1.442695
    %v638 = vpow.pop %v637
    %v639 = vmul.f32 %v613, 1.442695
    %v640 = vpow.pop %v639
    %v641 = vmul.f32 %v614, 1.442695
    %v642 = vpow.pop %v641
    %v643 = vmul.f32 %v615, 1.442695
    %v644 = vpow.pop %v643
    %v645 = vmul.f32 %v616, 1.442695
    %v646 = vpow.pop %v645
    %v647 = vmul.f32 %v617, 1.442695
    %v648 = vpow.pop %v647
    %v649 = vmul.f32 %v618, 1.442695
    %v650 = vpow.pop %v649
    %651 = vadd.xlane.f32.xlu0 %v620
    %v652 = vpop.xlane.xlu0 %651
    %653 = vadd.xlane.f32.xlu0 %v622
    %v654 = vpop.xlane.xlu0 %653
    %655 = vadd.xlane.f32.xlu0 %v624
    %v656 = vpop.xlane.xlu0 %655
    %657 = vadd.xlane.f32.xlu0 %v626
    %v658 = vpop.xlane.xlu0 %657
    %659 = vadd.xlane.f32.xlu0 %v628
    %v660 = vpop.xlane.xlu0 %659
    %661 = vadd.xlane.f32.xlu0 %v630
    %v662 = vpop.xlane.xlu0 %661
    %663 = vadd.xlane.f32.xlu0 %v632
    %v664 = vpop.xlane.xlu0 %663
    %665 = vadd.xlane.f32.xlu0 %v634
    %v666 = vpop.xlane.xlu0 %665
    %667 = vadd.xlane.f32.xlu0 %v636
    %v668 = vpop.xlane.xlu0 %667
    %669 = vadd.xlane.f32.xlu0 %v638
    %v670 = vpop.xlane.xlu0 %669
    %671 = vadd.xlane.f32.xlu0 %v640
    %v672 = vpop.xlane.xlu0 %671
    %673 = vadd.xlane.f32.xlu0 %v642
    %v674 = vpop.xlane.xlu0 %673
    %675 = vadd.xlane.f32.xlu0 %v644
    %v676 = vpop.xlane.xlu0 %675
    %677 = vadd.xlane.f32.xlu0 %v646
    %v678 = vpop.xlane.xlu0 %677
    %679 = vadd.xlane.f32.xlu0 %v648
    %v680 = vpop.xlane.xlu0 %679
    %681 = vadd.xlane.f32.xlu0 %v650
    %v682 = vpop.xlane.xlu0 %681
    %v683 = vrcp.pop %v652
    %v684 = vmul.f32 %v652, %v683
    %v685 = vsub.f32 1.0, %v684
    %v686 = vmul.f32 %v683, %v685
    %v687 = vadd.f32 %v683, %v686
    %vm688 = vweird.f32 %v652
    %vm689 = vweird.f32 %v683
    %vm690 = vmor %vm688, %vm689
    %v691 = vsel %vm690, %v683, %v687
    %v692 = vand.u32 2147483647, %v652
    %vm693 = vcmp.eq.f32.partialorder %v692, 8.507059e+37
    %v694 = vand.u32 %v652, 2147483648
    %v695 = vor.u32 1.1754944e-38, %v694
    %v696 = vsel %vm693, %v695, %v691
    %v697 = vmul.f32 %v620, %v696
    %v698 = vrcp.pop %v654
    %v699 = vmul.f32 %v654, %v698
    %v700 = vsub.f32 1.0, %v699
    %v701 = vmul.f32 %v698, %v700
    %v702 = vadd.f32 %v698, %v701
    %vm703 = vweird.f32 %v654
    %vm704 = vweird.f32 %v698
    %vm705 = vmor %vm703, %vm704
    %v706 = vsel %vm705, %v698, %v702
    %v707 = vand.u32 2147483647, %v654
    %vm708 = vcmp.eq.f32.partialorder %v707, 8.507059e+37
    %v709 = vand.u32 %v654, 2147483648
    %v710 = vor.u32 1.1754944e-38, %v709
    %v711 = vsel %vm708, %v710, %v706
    %v712 = vmul.f32 %v622, %v711
    %v713 = vrcp.pop %v656
    %v714 = vmul.f32 %v656, %v713
    %v715 = vsub.f32 1.0, %v714
    %v716 = vmul.f32 %v713, %v715
    %v717 = vadd.f32 %v713, %v716
    %vm718 = vweird.f32 %v656
    %vm719 = vweird.f32 %v713
    %vm720 = vmor %vm718, %vm719
    %v721 = vsel %vm720, %v713, %v717
    %v722 = vand.u32 2147483647, %v656
    %vm723 = vcmp.eq.f32.partialorder %v722, 8.507059e+37
    %v724 = vand.u32 %v656, 2147483648
    %v725 = vor.u32 1.1754944e-38, %v724
    %v726 = vsel %vm723, %v725, %v721
    %v727 = vmul.f32 %v624, %v726
    %v728 = vrcp.pop %v658
    %v729 = vmul.f32 %v658, %v728
    %v730 = vsub.f32 1.0, %v729
    %v731 = vmul.f32 %v728, %v730
    %v732 = vadd.f32 %v728, %v731
    %vm733 = vweird.f32 %v658
    %vm734 = vweird.f32 %v728
    %vm735 = vmor %vm733, %vm734
    %v736 = vsel %vm735, %v728, %v732
    %v737 = vand.u32 2147483647, %v658
    %vm738 = vcmp.eq.f32.partialorder %v737, 8.507059e+37
    %v739 = vand.u32 %v658, 2147483648
    %v740 = vor.u32 1.1754944e-38, %v739
    %v741 = vsel %vm738, %v740, %v736
    %v742 = vmul.f32 %v626, %v741
    %v743 = vrcp.pop %v660
    %v744 = vmul.f32 %v660, %v743
    %v745 = vsub.f32 1.0, %v744
    %v746 = vmul.f32 %v743, %v745
    %v747 = vadd.f32 %v743, %v746
    %vm748 = vweird.f32 %v660
    %vm749 = vweird.f32 %v743
    %vm750 = vmor %vm748, %vm749
    %v751 = vsel %vm750, %v743, %v747
    %v752 = vand.u32 2147483647, %v660
    %vm753 = vcmp.eq.f32.partialorder %v752, 8.507059e+37
    %v754 = vand.u32 %v660, 2147483648
    %v755 = vor.u32 1.1754944e-38, %v754
    %v756 = vsel %vm753, %v755, %v751
    %v757 = vmul.f32 %v628, %v756
    %v758 = vrcp.pop %v662
    %v759 = vmul.f32 %v662, %v758
    %v760 = vsub.f32 1.0, %v759
    %v761 = vmul.f32 %v758, %v760
    %v762 = vadd.f32 %v758, %v761
    %vm763 = vweird.f32 %v662
    %vm764 = vweird.f32 %v758
    %vm765 = vmor %vm763, %vm764
    %v766 = vsel %vm765, %v758, %v762
    %v767 = vand.u32 2147483647, %v662
    %vm768 = vcmp.eq.f32.partialorder %v767, 8.507059e+37
    %v769 = vand.u32 %v662, 2147483648
    %v770 = vor.u32 1.1754944e-38, %v769
    %v771 = vsel %vm768, %v770, %v766
    %v772 = vmul.f32 %v630, %v771
    %v773 = vrcp.pop %v664
    %v774 = vmul.f32 %v664, %v773
    %v775 = vsub.f32 1.0, %v774
    %v776 = vmul.f32 %v773, %v775
    %v777 = vadd.f32 %v773, %v776
    %vm778 = vweird.f32 %v664
    %vm779 = vweird.f32 %v773
    %vm780 = vmor %vm778, %vm779
    %v781 = vsel %vm780, %v773, %v777
    %v782 = vand.u32 2147483647, %v664
    %vm783 = vcmp.eq.f32.partialorder %v782, 8.507059e+37
    %v784 = vand.u32 %v664, 2147483648
    %v785 = vor.u32 1.1754944e-38, %v784
    %v786 = vsel %vm783, %v785, %v781
    %v787 = vmul.f32 %v632, %v786
    %v788 = vrcp.pop %v666
    %v789 = vmul.f32 %v666, %v788
    %v790 = vsub.f32 1.0, %v789
    %v791 = vmul.f32 %v788, %v790
    %v792 = vadd.f32 %v788, %v791
    %vm793 = vweird.f32 %v666
    %vm794 = vweird.f32 %v788
    %vm795 = vmor %vm793, %vm794
    %v796 = vsel %vm795, %v788, %v792
    %v797 = vand.u32 2147483647, %v666
    %vm798 = vcmp.eq.f32.partialorder %v797, 8.507059e+37
    %v799 = vand.u32 %v666, 2147483648
    %v800 = vor.u32 1.1754944e-38, %v799
    %v801 = vsel %vm798, %v800, %v796
    %v802 = vmul.f32 %v634, %v801
    %v803 = vrcp.pop %v668
    %v804 = vmul.f32 %v668, %v803
    %v805 = vsub.f32 1.0, %v804
    %v806 = vmul.f32 %v803, %v805
    %v807 = vadd.f32 %v803, %v806
    %vm808 = vweird.f32 %v668
    %vm809 = vweird.f32 %v803
    %vm810 = vmor %vm808, %vm809
    %v811 = vsel %vm810, %v803, %v807
    %v812 = vand.u32 2147483647, %v668
    %vm813 = vcmp.eq.f32.partialorder %v812, 8.507059e+37
    %v814 = vand.u32 %v668, 2147483648
    %v815 = vor.u32 1.1754944e-38, %v814
    %v816 = vsel %vm813, %v815, %v811
    %v817 = vmul.f32 %v636, %v816
    %v818 = vrcp.pop %v670
    %v819 = vmul.f32 %v670, %v818
    %v820 = vsub.f32 1.0, %v819
    %v821 = vmul.f32 %v818, %v820
    %v822 = vadd.f32 %v818, %v821
    %vm823 = vweird.f32 %v670
    %vm824 = vweird.f32 %v818
    %vm825 = vmor %vm823, %vm824
    %v826 = vsel %vm825, %v818, %v822
    %v827 = vand.u32 2147483647, %v670
    %vm828 = vcmp.eq.f32.partialorder %v827, 8.507059e+37
    %v829 = vand.u32 %v670, 2147483648
    %v830 = vor.u32 1.1754944e-38, %v829
    %v831 = vsel %vm828, %v830, %v826
    %v832 = vmul.f32 %v638, %v831
    %v833 = vrcp.pop %v672
    %v834 = vmul.f32 %v672, %v833
    %v835 = vsub.f32 1.0, %v834
    %v836 = vmul.f32 %v833, %v835
    %v837 = vadd.f32 %v833, %v836
    %vm838 = vweird.f32 %v672
    %vm839 = vweird.f32 %v833
    %vm840 = vmor %vm838, %vm839
    %v841 = vsel %vm840, %v833, %v837
    %v842 = vand.u32 2147483647, %v672
    %vm843 = vcmp.eq.f32.partialorder %v842, 8.507059e+37
    %v844 = vand.u32 %v672, 2147483648
    %v845 = vor.u32 1.1754944e-38, %v844
    %v846 = vsel %vm843, %v845, %v841
    %v847 = vmul.f32 %v640, %v846
    %v848 = vrcp.pop %v674
    %v849 = vmul.f32 %v674, %v848
    %v850 = vsub.f32 1.0, %v849
    %v851 = vmul.f32 %v848, %v850
    %v852 = vadd.f32 %v848, %v851
    %vm853 = vweird.f32 %v674
    %vm854 = vweird.f32 %v848
    %vm855 = vmor %vm853, %vm854
    %v856 = vsel %vm855, %v848, %v852
    %v857 = vand.u32 2147483647, %v674
    %vm858 = vcmp.eq.f32.partialorder %v857, 8.507059e+37
    %v859 = vand.u32 %v674, 2147483648
    %v860 = vor.u32 1.1754944e-38, %v859
    %v861 = vsel %vm858, %v860, %v856
    %v862 = vmul.f32 %v642, %v861
    %v863 = vrcp.pop %v676
    %v864 = vmul.f32 %v676, %v863
    %v865 = vsub.f32 1.0, %v864
    %v866 = vmul.f32 %v863, %v865
    %v867 = vadd.f32 %v863, %v866
    %vm868 = vweird.f32 %v676
    %vm869 = vweird.f32 %v863
    %vm870 = vmor %vm868, %vm869
    %v871 = vsel %vm870, %v863, %v867
    %v872 = vand.u32 2147483647, %v676
    %vm873 = vcmp.eq.f32.partialorder %v872, 8.507059e+37
    %v874 = vand.u32 %v676, 2147483648
    %v875 = vor.u32 1.1754944e-38, %v874
    %v876 = vsel %vm873, %v875, %v871
    %v877 = vmul.f32 %v644, %v876
    %v878 = vrcp.pop %v678
    %v879 = vmul.f32 %v678, %v878
    %v880 = vsub.f32 1.0, %v879
    %v881 = vmul.f32 %v878, %v880
    %v882 = vadd.f32 %v878, %v881
    %vm883 = vweird.f32 %v678
    %vm884 = vweird.f32 %v878
    %vm885 = vmor %vm883, %vm884
    %v886 = vsel %vm885, %v878, %v882
    %v887 = vand.u32 2147483647, %v678
    %vm888 = vcmp.eq.f32.partialorder %v887, 8.507059e+37
    %v889 = vand.u32 %v678, 2147483648
    %v890 = vor.u32 1.1754944e-38, %v889
    %v891 = vsel %vm888, %v890, %v886
    %v892 = vmul.f32 %v646, %v891
    %v893 = vrcp.pop %v680
    %v894 = vmul.f32 %v680, %v893
    %v895 = vsub.f32 1.0, %v894
    %v896 = vmul.f32 %v893, %v895
    %v897 = vadd.f32 %v893, %v896
    %vm898 = vweird.f32 %v680
    %vm899 = vweird.f32 %v893
    %vm900 = vmor %vm898, %vm899
    %v901 = vsel %vm900, %v893, %v897
    %v902 = vand.u32 2147483647, %v680
    %vm903 = vcmp.eq.f32.partialorder %v902, 8.507059e+37
    %v904 = vand.u32 %v680, 2147483648
    %v905 = vor.u32 1.1754944e-38, %v904
    %v906 = vsel %vm903, %v905, %v901
    %v907 = vmul.f32 %v648, %v906
    %v908 = vrcp.pop %v682
    %v909 = vmul.f32 %v682, %v908
    %v910 = vsub.f32 1.0, %v909
    %v911 = vmul.f32 %v908, %v910
    %v912 = vadd.f32 %v908, %v911
    %vm913 = vweird.f32 %v682
    %vm914 = vweird.f32 %v908
    %vm915 = vmor %vm913, %vm914
    %v916 = vsel %vm915, %v908, %v912
    %v917 = vand.u32 2147483647, %v682
    %vm918 = vcmp.eq.f32.partialorder %v917, 8.507059e+37
    %v919 = vand.u32 %v682, 2147483648
    %v920 = vor.u32 1.1754944e-38, %v919
    %v921 = vsel %vm918, %v920, %v916
    %v922 = vmul.f32 %v650, %v921
    %923 = vst [vmem:[%s7] sm:$0xff] %v697
    %924 = vst [vmem:[%s7 + $0x8] sm:$0xff] %v712
    %925 = vst [vmem:[%s7 + $0x10] sm:$0xff] %v727
    %926 = vst [vmem:[%s7 + $0x18] sm:$0xff] %v742
    %927 = vst [vmem:[%s7 + $0x20] sm:$0xff] %v757
    %928 = vst [vmem:[%s7 + $0x28] sm:$0xff] %v772
    %929 = vst [vmem:[%s7 + $0x30] sm:$0xff] %v787
    %930 = vst [vmem:[%s7 + $0x38] sm:$0xff] %v802
    %931 = vst [vmem:[%s7 + $0x40] sm:$0xff] %v817
    %932 = vst [vmem:[%s7 + $0x48] sm:$0xff] %v832
    %933 = vst [vmem:[%s7 + $0x50] sm:$0xff] %v847
    %934 = vst [vmem:[%s7 + $0x58] sm:$0xff] %v862
    %935 = vst [vmem:[%s7 + $0x60] sm:$0xff] %v877
    %936 = vst [vmem:[%s7 + $0x68] sm:$0xff] %v892
    %937 = vst [vmem:[%s7 + $0x70] sm:$0xff] %v907
    %938 = vst [vmem:[%s7 + $0x78] sm:$0xff] %v922
  $region33: #{gnn_backbone_forward.3} parent=0 // pred_fallthru
    _
  // Predicated region
  $region34: #{gnn_backbone_forward.3} parent=0 // pred_check
    _
  $region35: #{gnn_backbone_forward.3} parent=0 // pred_check_branch
    %940 = sbr.rel (0) target = $region37
  $region36: #{gnn_backbone_forward.3} parent=0 // pred_region
    _
  $region37: #{gnn_backbone_forward.3} parent=0 // pred_fallthru
    _
  // Predicated region
  $region38: #{gnn_backbone_forward.3} parent=0 // pred_check
    _
  $region39: #{gnn_backbone_forward.3} parent=0 // pred_check_branch
    %942 = sbr.rel (0) target = $region41
  $region40: #{gnn_backbone_forward.3} parent=0 // pred_region
    _
  $region41: #{gnn_backbone_forward.3} parent=0 // pred_fallthru
    _
  // Predicated region
  $region42: #{gnn_backbone_forward.3} parent=0 // pred_check
    _
  $region43: #{gnn_backbone_forward.3} parent=0 // pred_check_branch
    %944 = sbr.rel (0) target = $region45
  $region44: #{gnn_backbone_forward.3} parent=0 // pred_region
    _
  $region45: #{gnn_backbone_forward.3} parent=0 // pred_fallthru
    _
  // Predicated region
  $region46: #{gnn_backbone_forward.3} parent=0 // pred_check
    _
  $region47: #{gnn_backbone_forward.3} parent=0 // pred_check_branch
    %946 = sbr.rel (0) target = $region49
  $region48: #{gnn_backbone_forward.3} parent=0 // pred_region
    _
  $region49: #{gnn_backbone_forward.3} parent=0 // pred_fallthru
    _

</llo_original>
